<compile_context>
chip_gen: v7x
topology: tpu7x:2x2x1
jax: 0.10.0
libtpu: 0.0.40
codegen_flags: <defaults>
</compile_context>

<pallas_src>
import functools

import jax
import jax.numpy as jnp
import numpy as np
from jax.experimental import pallas as pl
from jax.experimental.pallas import tpu as pltpu

_LN_EPS = 1e-5

PARAM_ORDER = [
    "w1", "b1", "g1", "bt1",
    "w2", "b2", "g2", "bt2",
    "w3", "b3",
    "hw1", "hb1", "hw2", "hb2", "hw3", "hb3",
]


def _cnn_kernel(x_ref,
                w1_ref, b1_ref, g1_ref, bt1_ref,
                w2_ref, b2_ref, g2_ref, bt2_ref,
                w3_ref, b3_ref,
                hw1_ref, hb1_ref, hw2_ref, hb2_ref, hw3_ref, hb3_ref,
                out_ref,
                pad_ref, cols_ref, y3_ref, feat_ref):
    Bt, L, Cin = x_ref.shape
    L4 = (L // 2) // 2                                   # sequence length after both pools

    def im2col3(h):
        """(Lc, Ci) -> (Lc, 3*Ci): zero-padded 'same' windows for a k=3 conv."""
        Lc = h.shape[0]
        pad_ref[pl.ds(0, 1), :] = jnp.zeros((1, Cin), jnp.float32)
        pad_ref[pl.ds(1, Lc), :] = h
        pad_ref[pl.ds(Lc + 1, 1), :] = jnp.zeros((1, Cin), jnp.float32)
        prev = pad_ref[pl.ds(0, Lc), :]                  # h[l-1] (0 at l=0)
        nxt = pad_ref[pl.ds(2, Lc), :]                   # h[l+1] (0 at l=Lc-1)
        return jnp.concatenate([prev, h, nxt], axis=-1)  # (Lc, 3*Ci)

    def conv3x1(h, w_ref, b_ref):
        """Conv1d(k=3, stride=1, padding=1) as one K=3*Ci matmul."""
        cols = im2col3(h)
        return jnp.dot(cols, w_ref[...], preferred_element_type=jnp.float32) + b_ref[...]

    def layer_norm(h, g_ref, bt_ref):
        """nn.LayerNorm((C, L)): stats over the whole (L, C) slice, one-pass var."""
        mu = jnp.mean(h)
        var = jnp.maximum(jnp.mean(h * h) - mu * mu, 0.0)
        return (h - mu) * jax.lax.rsqrt(var + _LN_EPS) * g_ref[...] + bt_ref[...]

    def maxpool2(h):
        """MaxPool1d(2) along the sequence axis (floor; odd trailing row dropped)."""
        Lc = h.shape[0]
        n = Lc // 2
        pad_ref[pl.ds(0, Lc), :] = h
        even = pad_ref[pl.ds(0, n, stride=2), :]
        odd = pad_ref[pl.ds(1, n, stride=2), :]
        return jnp.maximum(even, odd)

    # --- conv1/conv2 stack per sample (small M/K/N matmuls); stage conv3 im2col ---
    # nn.LeakyReLU(True) has negative_slope == 1.0 -> identity; Dropout -> identity.
    for s in range(Bt):
        h = x_ref[s].astype(jnp.float32)                 # (L, Cin)
        h = conv3x1(h, w1_ref, b1_ref)
        h = layer_norm(h, g1_ref, bt1_ref)
        h = maxpool2(h)                                  # (L//2, Cin)
        h = conv3x1(h, w2_ref, b2_ref)
        h = layer_norm(h, g2_ref, bt2_ref)
        h = maxpool2(h)                                  # (L4, Cin)
        cols_ref[pl.ds(s * L4, L4), :] = im2col3(h)      # stage conv3 rows, contiguous

    # --- conv3 for the whole batch tile in ONE bf16 MXU matmul (M = Bt*L4) ---
    y3_ref[...] = jnp.dot(cols_ref[...].astype(jnp.bfloat16), w3_ref[...],
                          preferred_element_type=jnp.float32)     # (Bt*L4, Cout)

    # --- global max over sequence per sample; conv3 bias added after the max ---
    for s in range(Bt):
        feat_ref[pl.ds(s, 1), :] = jnp.max(y3_ref[pl.ds(s * L4, L4), :],
                                           axis=0, keepdims=True)

    # --- fused regression + classification heads, batched (M = Bt) ---
    f = (feat_ref[...] + b3_ref[...]).astype(jnp.bfloat16)        # (Bt, Cout)
    z = jnp.dot(f, hw1_ref[...], preferred_element_type=jnp.float32) + hb1_ref[...]
    z = jnp.dot(z.astype(jnp.bfloat16), hw2_ref[...],
                preferred_element_type=jnp.float32) + hb2_ref[...]
    z = jnp.dot(z.astype(jnp.bfloat16), hw3_ref[...],
                preferred_element_type=jnp.float32) + hb3_ref[...]        # (Bt, 2)
    lane = jax.lax.broadcasted_iota(jnp.int32, z.shape, 1)
    out_ref[...] = jnp.where(lane == 1, jax.nn.sigmoid(z), z)  # col0=reg, col1=sigmoid(cls)


@functools.partial(jax.jit, static_argnames=("block_b",))
def cnn_model_forward(x, params, block_b=8):
    """x: (B, seq_len, in_dim) float32. Returns (cls_out, reg_out), each (B, 1)."""
    B, L, Cin = x.shape
    conv_out = params["b3"].shape[1]
    L4 = (L // 2) // 2
    Bt = min(B, block_b)
    Bpad = pl.cdiv(B, Bt) * Bt
    if Bpad != B:  # pad batch to a multiple of the batch tile; padded rows are discarded
        x = jnp.concatenate([x, jnp.zeros((Bpad - B, L, Cin), x.dtype)], axis=0)

    plist = [params[k] for k in PARAM_ORDER]
    in_specs = [pl.BlockSpec((Bt, L, Cin), lambda b: (b, 0, 0))]
    for p in plist:
        in_specs.append(pl.BlockSpec(p.shape, lambda b, _n=p.ndim: (0,) * _n))

    out = pl.pallas_call(
        _cnn_kernel,
        out_shape=jax.ShapeDtypeStruct((Bpad, 2), jnp.float32),
        grid_spec=pltpu.PrefetchScalarGridSpec(
            num_scalar_prefetch=0,
            grid=(Bpad // Bt,),
            in_specs=in_specs,
            out_specs=pl.BlockSpec((Bt, 2), lambda b: (b, 0)),
            scratch_shapes=[
                pltpu.VMEM((L + 2, Cin), jnp.float32),          # conv pad / pool staging
                pltpu.VMEM((Bt * L4, 3 * Cin), jnp.float32),    # staged conv3 im2col rows
                pltpu.VMEM((Bt * L4, conv_out), jnp.float32),   # batched conv3 output
                pltpu.VMEM((Bt, conv_out), jnp.float32),        # pooled per-sample features
            ]),
        compiler_params=pltpu.CompilerParams(
            dimension_semantics=("parallel",)),                 # batch axis is parallel
    )(x, *plist)

    reg_out = out[:B, 0:1]
    cls_out = out[:B, 1:2]
    return cls_out, reg_out


# ----------------------- parameter construction / reference -----------------------

def init_torch_params(key, in_dim, conv_out, seq_len):
    """Deterministic synthetic parameters in the original torch layouts."""
    H = conv_out // 4
    ks = jax.random.split(key, 12)

    def conv_w(k, co, ci):
        return 0.1 * jax.random.normal(k, (co, ci, 3), jnp.float32)     # (Co, Ci, K)

    def lin_w(k, o, i):
        return 0.01 * jax.random.normal(k, (o, i), jnp.float32)         # (out, in)

    return {
        "conv1_w": conv_w(ks[0], in_dim, in_dim),
        "conv1_b": 0.05 * jax.random.normal(ks[1], (in_dim,), jnp.float32),
        "ln1_g": jnp.ones((in_dim, seq_len), jnp.float32),
        "ln1_b": jnp.zeros((in_dim, seq_len), jnp.float32),
        "conv2_w": conv_w(ks[2], in_dim, in_dim),
        "conv2_b": 0.05 * jax.random.normal(ks[3], (in_dim,), jnp.float32),
        "ln2_g": jnp.ones((in_dim, seq_len // 2), jnp.float32),
        "ln2_b": jnp.zeros((in_dim, seq_len // 2), jnp.float32),
        "conv3_w": conv_w(ks[4], conv_out, in_dim),
        "conv3_b": 0.05 * jax.random.normal(ks[5], (conv_out,), jnp.float32),
        "rw1": lin_w(ks[6], H, conv_out), "rb1": jnp.zeros((H,), jnp.float32),
        "rw2": lin_w(ks[7], H, H),        "rb2": jnp.zeros((H,), jnp.float32),
        "rw3": lin_w(ks[8], 1, H),        "rb3": jnp.zeros((1,), jnp.float32),
        "cw1": lin_w(ks[9], H, conv_out), "cb1": jnp.zeros((H,), jnp.float32),
        "cw2": lin_w(ks[10], H, H),       "cb2": jnp.zeros((H,), jnp.float32),
        "cw3": lin_w(ks[11], 1, H),       "cb3": jnp.zeros((1,), jnp.float32),
    }


def to_kernel_params(tp):
    """Transpose / fuse torch-layout params into the kernel layout."""
    def conv_fused(w):                     # (Co, Ci, 3) -> (3*Ci, Co), tap-major rows
        ci, co = w.shape[1], w.shape[0]
        return jnp.transpose(w, (2, 1, 0)).reshape(3 * ci, co)

    H = tp["rw1"].shape[0]
    zH = jnp.zeros((H, H), jnp.float32)
    z1 = jnp.zeros((H, 1), jnp.float32)
    hw1 = jnp.concatenate([tp["rw1"].T, tp["cw1"].T], axis=1)            # (Co, 2H)
    hw2 = jnp.concatenate(
        [jnp.concatenate([tp["rw2"].T, zH], axis=1),
         jnp.concatenate([zH, tp["cw2"].T], axis=1)], axis=0)            # (2H, 2H)
    hw3 = jnp.concatenate(
        [jnp.concatenate([tp["rw3"].T, z1], axis=1),
         jnp.concatenate([z1, tp["cw3"].T], axis=1)], axis=0)            # (2H, 2)
    return {
        "w1": conv_fused(tp["conv1_w"]), "b1": tp["conv1_b"][None, :],
        "g1": tp["ln1_g"].T, "bt1": tp["ln1_b"].T,
        "w2": conv_fused(tp["conv2_w"]), "b2": tp["conv2_b"][None, :],
        "g2": tp["ln2_g"].T, "bt2": tp["ln2_b"].T,
        "w3": conv_fused(tp["conv3_w"]).astype(jnp.bfloat16),
        "b3": tp["conv3_b"][None, :],
        "hw1": hw1.astype(jnp.bfloat16),
        "hb1": jnp.concatenate([tp["rb1"], tp["cb1"]])[None, :],
        "hw2": hw2.astype(jnp.bfloat16),
        "hb2": jnp.concatenate([tp["rb2"], tp["cb2"]])[None, :],
        "hw3": hw3.astype(jnp.bfloat16),
        "hb3": jnp.concatenate([tp["rb3"], tp["cb3"]])[None, :],
    }


def reference_forward(x, tp):
    """Pure-JAX (f32) reference of CNNModel.forward, from torch-layout params."""
    def conv1d(h, w, b):                   # h: (L, Ci); w: (Co, Ci, 3); 'same' padding
        zrow = jnp.zeros((1, h.shape[1]), h.dtype)
        prev = jnp.concatenate([zrow, h[:-1]], axis=0)
        nxt = jnp.concatenate([h[1:], zrow], axis=0)
        return prev @ w[:, :, 0].T + h @ w[:, :, 1].T + nxt @ w[:, :, 2].T + b

    def layer_norm(h, g, b):               # g, b: (C, L_cur) torch layout
        mu = jnp.mean(h)
        var = jnp.mean((h - mu) ** 2)
        return (h - mu) / jnp.sqrt(var + _LN_EPS) * g.T + b.T

    def maxpool2(h):
        n = 2 * (h.shape[0] // 2)
        return jnp.maximum(h[0:n:2], h[1:n:2])

    def single(xs):                        # xs: (L, Cin); LeakyReLU(slope=1) == identity
        h = conv1d(xs, tp["conv1_w"], tp["conv1_b"])
        h = layer_norm(h, tp["ln1_g"], tp["ln1_b"])
        h = maxpool2(h)
        h = conv1d(h, tp["conv2_w"], tp["conv2_b"])
        h = layer_norm(h, tp["ln2_g"], tp["ln2_b"])
        h = maxpool2(h)
        h = conv1d(h, tp["conv3_w"], tp["conv3_b"])
        feat = jnp.max(h, axis=0)          # (Cout,)
        reg = tp["rw3"] @ (tp["rw2"] @ (tp["rw1"] @ feat + tp["rb1"]) + tp["rb2"]) + tp["rb3"]
        cls = tp["cw3"] @ (tp["cw2"] @ (tp["cw1"] @ feat + tp["cb1"]) + tp["cb2"]) + tp["cb3"]
        return jax.nn.sigmoid(cls), reg

    cls, reg = jax.vmap(single)(x)
    return cls, reg                        # each (B, 1)


if __name__ == "__main__":
    # Small shapes consistent with the module (original: in_dim=20, conv_out=1024, seq_len=201).
    B, in_dim, conv_out, seq_len = 2, 8, 64, 16

    key = jax.random.PRNGKey(0)
    kx, kp = jax.random.split(key)
    x = jax.random.normal(kx, (B, seq_len, in_dim), jnp.float32)  # module input: (B, seq_len, in_dim)

    torch_params = init_torch_params(kp, in_dim, conv_out, seq_len)
    params = to_kernel_params(torch_params)

    cls_out, reg_out = cnn_model_forward(x, params)
    jax.block_until_ready((cls_out, reg_out))

    assert cls_out.shape == (B, 1) and reg_out.shape == (B, 1)
    assert bool(jnp.all((cls_out >= 0.0) & (cls_out <= 1.0)))
    assert bool(jnp.all(jnp.isfinite(reg_out)))

    # Cross-check against the pure-JAX f32 reference (kernel uses bf16 matmuls -> loose tol).
    cls_ref, reg_ref = reference_forward(x, torch_params)
    np.testing.assert_allclose(np.asarray(cls_out), np.asarray(cls_ref), atol=1e-2, rtol=5e-2)
    np.testing.assert_allclose(np.asarray(reg_out), np.asarray(reg_ref), atol=1e-2, rtol=5e-2)

    print("KERNEL_OK")
</pallas_src>

<mosaic_0001>
module attributes {stable_mosaic.version = 11 : i64} {
  func.func @_cnn_kernel(%arg0: i32, %arg1: memref<2x16x8xf32, #tpu.memory_space<vmem>>, %arg2: memref<24x8xf32, #tpu.memory_space<vmem>>, %arg3: memref<1x8xf32, #tpu.memory_space<vmem>>, %arg4: memref<16x8xf32, #tpu.memory_space<vmem>>, %arg5: memref<16x8xf32, #tpu.memory_space<vmem>>, %arg6: memref<24x8xf32, #tpu.memory_space<vmem>>, %arg7: memref<1x8xf32, #tpu.memory_space<vmem>>, %arg8: memref<8x8xf32, #tpu.memory_space<vmem>>, %arg9: memref<8x8xf32, #tpu.memory_space<vmem>>, %arg10: memref<24x64xbf16, #tpu.memory_space<vmem>>, %arg11: memref<1x64xf32, #tpu.memory_space<vmem>>, %arg12: memref<64x32xbf16, #tpu.memory_space<vmem>>, %arg13: memref<1x32xf32, #tpu.memory_space<vmem>>, %arg14: memref<32x32xbf16, #tpu.memory_space<vmem>>, %arg15: memref<1x32xf32, #tpu.memory_space<vmem>>, %arg16: memref<32x2xbf16, #tpu.memory_space<vmem>>, %arg17: memref<1x2xf32, #tpu.memory_space<vmem>>, %arg18: memref<2x2xf32, #tpu.memory_space<vmem>>, %arg19: memref<18x8xf32, #tpu.memory_space<vmem>>, %arg20: memref<8x24xf32, #tpu.memory_space<vmem>>, %arg21: memref<8x64xf32, #tpu.memory_space<vmem>>, %arg22: memref<2x64xf32, #tpu.memory_space<vmem>>) attributes {dimension_semantics = [#tpu.dimension_semantics<parallel>], iteration_bounds = array<i64: 1>, scalar_prefetch = 0 : i64, scratch_operands = 4 : i64, tpu.core_type = #tpu.core_type<tc>, window_params = [{transform_indices = @transform_0, window_bounds = array<i64: 2, 16, 8>}, {pipeline_mode = #tpu.pipeline_mode<synchronous>, transform_indices = @transform_1, window_bounds = array<i64: 24, 8>}, {pipeline_mode = #tpu.pipeline_mode<synchronous>, transform_indices = @transform_2, window_bounds = array<i64: 1, 8>}, {pipeline_mode = #tpu.pipeline_mode<synchronous>, transform_indices = @transform_3, window_bounds = array<i64: 16, 8>}, {pipeline_mode = #tpu.pipeline_mode<synchronous>, transform_indices = @transform_4, window_bounds = array<i64: 16, 8>}, {pipeline_mode = #tpu.pipeline_mode<synchronous>, transform_indices = @transform_5, window_bounds = array<i64: 24, 8>}, {pipeline_mode = #tpu.pipeline_mode<synchronous>, transform_indices = @transform_6, window_bounds = array<i64: 1, 8>}, {pipeline_mode = #tpu.pipeline_mode<synchronous>, transform_indices = @transform_7, window_bounds = array<i64: 8, 8>}, {pipeline_mode = #tpu.pipeline_mode<synchronous>, transform_indices = @transform_8, window_bounds = array<i64: 8, 8>}, {pipeline_mode = #tpu.pipeline_mode<synchronous>, transform_indices = @transform_9, window_bounds = array<i64: 24, 64>}, {pipeline_mode = #tpu.pipeline_mode<synchronous>, transform_indices = @transform_10, window_bounds = array<i64: 1, 64>}, {pipeline_mode = #tpu.pipeline_mode<synchronous>, transform_indices = @transform_11, window_bounds = array<i64: 64, 32>}, {pipeline_mode = #tpu.pipeline_mode<synchronous>, transform_indices = @transform_12, window_bounds = array<i64: 1, 32>}, {pipeline_mode = #tpu.pipeline_mode<synchronous>, transform_indices = @transform_13, window_bounds = array<i64: 32, 32>}, {pipeline_mode = #tpu.pipeline_mode<synchronous>, transform_indices = @transform_14, window_bounds = array<i64: 1, 32>}, {pipeline_mode = #tpu.pipeline_mode<synchronous>, transform_indices = @transform_15, window_bounds = array<i64: 32, 2>}, {pipeline_mode = #tpu.pipeline_mode<synchronous>, transform_indices = @transform_16, window_bounds = array<i64: 1, 2>}, {transform_indices = @transform_17, window_bounds = array<i64: 2, 2>}]} {
    %c0 = arith.constant 0 : index
    %c0_0 = arith.constant 0 : index
    %c0_1 = arith.constant 0 : index
    %0 = vector.load %arg1[%c0, %c0_0, %c0_1] : memref<2x16x8xf32, #tpu.memory_space<vmem>>, vector<1x16x8xf32>
    %1 = vector.shape_cast %0 : vector<1x16x8xf32> to vector<16x8xf32>
    %cst = arith.constant 0.000000e+00 : f32
    %2 = vector.broadcast %cst : f32 to vector<1x8xf32>
    %c0_2 = arith.constant 0 : index
    %c0_3 = arith.constant 0 : index
    %3 = vector.load %arg19[%c0_2, %c0_3] : memref<18x8xf32, #tpu.memory_space<vmem>>, vector<1x8xf32>
    tpu.vector_store %arg19[%c0_2, %c0_3], %2 {strides = array<i32>} : memref<18x8xf32, #tpu.memory_space<vmem>>, vector<1x8xf32>,
    %c1 = arith.constant 1 : index
    %c0_4 = arith.constant 0 : index
    %4 = vector.load %arg19[%c1, %c0_4] : memref<18x8xf32, #tpu.memory_space<vmem>>, vector<16x8xf32>
    tpu.vector_store %arg19[%c1, %c0_4], %1 {strides = array<i32>} : memref<18x8xf32, #tpu.memory_space<vmem>>, vector<16x8xf32>,
    %cst_5 = arith.constant 0.000000e+00 : f32
    %5 = vector.broadcast %cst_5 : f32 to vector<1x8xf32>
    %c17 = arith.constant 17 : index
    %c0_6 = arith.constant 0 : index
    %6 = vector.load %arg19[%c17, %c0_6] : memref<18x8xf32, #tpu.memory_space<vmem>>, vector<1x8xf32>
    tpu.vector_store %arg19[%c17, %c0_6], %5 {strides = array<i32>} : memref<18x8xf32, #tpu.memory_space<vmem>>, vector<1x8xf32>,
    %c0_7 = arith.constant 0 : index
    %c0_8 = arith.constant 0 : index
    %7 = vector.load %arg19[%c0_7, %c0_8] : memref<18x8xf32, #tpu.memory_space<vmem>>, vector<16x8xf32>
    %c2 = arith.constant 2 : index
    %c0_9 = arith.constant 0 : index
    %8 = vector.load %arg19[%c2, %c0_9] : memref<18x8xf32, #tpu.memory_space<vmem>>, vector<16x8xf32>
    %9 = tpu.concatenate %7, %1, %8 in 1 : vector<16x8xf32>, vector<16x8xf32>, vector<16x8xf32> -> vector<16x24xf32>
    %c0_10 = arith.constant 0 : index
    %c0_11 = arith.constant 0 : index
    %10 = vector.load %arg2[%c0_10, %c0_11] : memref<24x8xf32, #tpu.memory_space<vmem>>, vector<24x8xf32>
    %cst_12 = arith.constant dense<0.000000e+00> : vector<16x8xf32>
    %11 = tpu.matmul %9, %10, %cst_12 {dimension_numbers = #tpu.dot_dimension_numbers<[1], [0], [0], [1], [0, 0, 1, 1], [], []>} : vector<16x24xf32>, vector<24x8xf32>, vector<16x8xf32> -> vector<16x8xf32>
    %c0_13 = arith.constant 0 : index
    %c0_14 = arith.constant 0 : index
    %12 = vector.load %arg3[%c0_13, %c0_14] : memref<1x8xf32, #tpu.memory_space<vmem>>, vector<1x8xf32>
    %13 = vector.broadcast %12 : vector<1x8xf32> to vector<16x8xf32>
    %14 = arith.addf %11, %13 : vector<16x8xf32>
    %15 = vector.shape_cast %14 : vector<16x8xf32> to vector<1x16x8xf32>
    %cst_15 = arith.constant dense<0.000000e+00> : vector<1xf32>
    %16 = vector.multi_reduction <add>, %15, %cst_15 [1, 2] : vector<1x16x8xf32> to vector<1xf32>
    %17 = vector.shape_cast %16 : vector<1xf32> to vector<1x1x1xf32>
    %18 = vector.extract %17[0, 0, 0] : f32 from vector<1x1x1xf32>
    %cst_16 = arith.constant 1.280000e+02 : f32
    %19 = arith.divf %18, %cst_16 : f32
    %20 = arith.mulf %14, %14 : vector<16x8xf32>
    %21 = vector.shape_cast %20 : vector<16x8xf32> to vector<1x16x8xf32>
    %cst_17 = arith.constant dense<0.000000e+00> : vector<1xf32>
    %22 = vector.multi_reduction <add>, %21, %cst_17 [1, 2] : vector<1x16x8xf32> to vector<1xf32>
    %23 = vector.shape_cast %22 : vector<1xf32> to vector<1x1x1xf32>
    %24 = vector.extract %23[0, 0, 0] : f32 from vector<1x1x1xf32>
    %cst_18 = arith.constant 1.280000e+02 : f32
    %25 = arith.divf %24, %cst_18 : f32
    %26 = arith.mulf %19, %19 : f32
    %27 = arith.subf %25, %26 : f32
    %cst_19 = arith.constant 0.000000e+00 : f32
    %28 = arith.maximumf %27, %cst_19 : f32
    %29 = vector.broadcast %19 : f32 to vector<16x8xf32>
    %30 = arith.subf %14, %29 : vector<16x8xf32>
    %cst_20 = arith.constant 9.99999974E-6 : f32
    %31 = arith.addf %28, %cst_20 : f32
    %32 = math.rsqrt %31 : f32
    %33 = vector.broadcast %32 : f32 to vector<16x8xf32>
    %34 = arith.mulf %30, %33 : vector<16x8xf32>
    %c0_21 = arith.constant 0 : index
    %c0_22 = arith.constant 0 : index
    %35 = vector.load %arg4[%c0_21, %c0_22] : memref<16x8xf32, #tpu.memory_space<vmem>>, vector<16x8xf32>
    %36 = arith.mulf %34, %35 : vector<16x8xf32>
    %c0_23 = arith.constant 0 : index
    %c0_24 = arith.constant 0 : index
    %37 = vector.load %arg5[%c0_23, %c0_24] : memref<16x8xf32, #tpu.memory_space<vmem>>, vector<16x8xf32>
    %38 = arith.addf %36, %37 : vector<16x8xf32>
    %c0_25 = arith.constant 0 : index
    %c0_26 = arith.constant 0 : index
    %39 = vector.load %arg19[%c0_25, %c0_26] : memref<18x8xf32, #tpu.memory_space<vmem>>, vector<16x8xf32>
    tpu.vector_store %arg19[%c0_25, %c0_26], %38 {strides = array<i32>} : memref<18x8xf32, #tpu.memory_space<vmem>>, vector<16x8xf32>,
    %c0_27 = arith.constant 0 : index
    %c0_28 = arith.constant 0 : index
    %40 = tpu.strided_load %arg19[%c0_27, %c0_28] {strides = array<i32: 2, 1>} : memref<18x8xf32, #tpu.memory_space<vmem>>, vector<8x8xf32>
    %c1_29 = arith.constant 1 : index
    %c0_30 = arith.constant 0 : index
    %41 = tpu.strided_load %arg19[%c1_29, %c0_30] {strides = array<i32: 2, 1>} : memref<18x8xf32, #tpu.memory_space<vmem>>, vector<8x8xf32>
    %42 = arith.maximumf %40, %41 : vector<8x8xf32>
    %cst_31 = arith.constant 0.000000e+00 : f32
    %43 = vector.broadcast %cst_31 : f32 to vector<1x8xf32>
    %c0_32 = arith.constant 0 : index
    %c0_33 = arith.constant 0 : index
    %44 = vector.load %arg19[%c0_32, %c0_33] : memref<18x8xf32, #tpu.memory_space<vmem>>, vector<1x8xf32>
    tpu.vector_store %arg19[%c0_32, %c0_33], %43 {strides = array<i32>} : memref<18x8xf32, #tpu.memory_space<vmem>>, vector<1x8xf32>,
    %c1_34 = arith.constant 1 : index
    %c0_35 = arith.constant 0 : index
    %45 = vector.load %arg19[%c1_34, %c0_35] : memref<18x8xf32, #tpu.memory_space<vmem>>, vector<8x8xf32>
    tpu.vector_store %arg19[%c1_34, %c0_35], %42 {strides = array<i32>} : memref<18x8xf32, #tpu.memory_space<vmem>>, vector<8x8xf32>,
    %cst_36 = arith.constant 0.000000e+00 : f32
    %46 = vector.broadcast %cst_36 : f32 to vector<1x8xf32>
    %c9 = arith.constant 9 : index
    %c0_37 = arith.constant 0 : index
    %47 = vector.load %arg19[%c9, %c0_37] : memref<18x8xf32, #tpu.memory_space<vmem>>, vector<1x8xf32>
    tpu.vector_store %arg19[%c9, %c0_37], %46 {strides = array<i32>} : memref<18x8xf32, #tpu.memory_space<vmem>>, vector<1x8xf32>,
    %c0_38 = arith.constant 0 : index
    %c0_39 = arith.constant 0 : index
    %48 = vector.load %arg19[%c0_38, %c0_39] : memref<18x8xf32, #tpu.memory_space<vmem>>, vector<8x8xf32>
    %c2_40 = arith.constant 2 : index
    %c0_41 = arith.constant 0 : index
    %49 = vector.load %arg19[%c2_40, %c0_41] : memref<18x8xf32, #tpu.memory_space<vmem>>, vector<8x8xf32>
    %50 = tpu.concatenate %48, %42, %49 in 1 : vector<8x8xf32>, vector<8x8xf32>, vector<8x8xf32> -> vector<8x24xf32>
    %c0_42 = arith.constant 0 : index
    %c0_43 = arith.constant 0 : index
    %51 = vector.load %arg6[%c0_42, %c0_43] : memref<24x8xf32, #tpu.memory_space<vmem>>, vector<24x8xf32>
    %cst_44 = arith.constant dense<0.000000e+00> : vector<8x8xf32>
    %52 = tpu.matmul %50, %51, %cst_44 {dimension_numbers = #tpu.dot_dimension_numbers<[1], [0], [0], [1], [0, 0, 1, 1], [], []>} : vector<8x24xf32>, vector<24x8xf32>, vector<8x8xf32> -> vector<8x8xf32>
    %c0_45 = arith.constant 0 : index
    %c0_46 = arith.constant 0 : index
    %53 = vector.load %arg7[%c0_45, %c0_46] : memref<1x8xf32, #tpu.memory_space<vmem>>, vector<1x8xf32>
    %54 = vector.broadcast %53 : vector<1x8xf32> to vector<8x8xf32>
    %55 = arith.addf %52, %54 : vector<8x8xf32>
    %56 = vector.shape_cast %55 : vector<8x8xf32> to vector<1x8x8xf32>
    %cst_47 = arith.constant dense<0.000000e+00> : vector<1xf32>
    %57 = vector.multi_reduction <add>, %56, %cst_47 [1, 2] : vector<1x8x8xf32> to vector<1xf32>
    %58 = vector.shape_cast %57 : vector<1xf32> to vector<1x1x1xf32>
    %59 = vector.extract %58[0, 0, 0] : f32 from vector<1x1x1xf32>
    %cst_48 = arith.constant 6.400000e+01 : f32
    %60 = arith.divf %59, %cst_48 : f32
    %61 = arith.mulf %55, %55 : vector<8x8xf32>
    %62 = vector.shape_cast %61 : vector<8x8xf32> to vector<1x8x8xf32>
    %cst_49 = arith.constant dense<0.000000e+00> : vector<1xf32>
    %63 = vector.multi_reduction <add>, %62, %cst_49 [1, 2] : vector<1x8x8xf32> to vector<1xf32>
    %64 = vector.shape_cast %63 : vector<1xf32> to vector<1x1x1xf32>
    %65 = vector.extract %64[0, 0, 0] : f32 from vector<1x1x1xf32>
    %cst_50 = arith.constant 6.400000e+01 : f32
    %66 = arith.divf %65, %cst_50 : f32
    %67 = arith.mulf %60, %60 : f32
    %68 = arith.subf %66, %67 : f32
    %cst_51 = arith.constant 0.000000e+00 : f32
    %69 = arith.maximumf %68, %cst_51 : f32
    %70 = vector.broadcast %60 : f32 to vector<8x8xf32>
    %71 = arith.subf %55, %70 : vector<8x8xf32>
    %cst_52 = arith.constant 9.99999974E-6 : f32
    %72 = arith.addf %69, %cst_52 : f32
    %73 = math.rsqrt %72 : f32
    %74 = vector.broadcast %73 : f32 to vector<8x8xf32>
    %75 = arith.mulf %71, %74 : vector<8x8xf32>
    %c0_53 = arith.constant 0 : index
    %c0_54 = arith.constant 0 : index
    %76 = vector.load %arg8[%c0_53, %c0_54] : memref<8x8xf32, #tpu.memory_space<vmem>>, vector<8x8xf32>
    %77 = arith.mulf %75, %76 : vector<8x8xf32>
    %c0_55 = arith.constant 0 : index
    %c0_56 = arith.constant 0 : index
    %78 = vector.load %arg9[%c0_55, %c0_56] : memref<8x8xf32, #tpu.memory_space<vmem>>, vector<8x8xf32>
    %79 = arith.addf %77, %78 : vector<8x8xf32>
    %c0_57 = arith.constant 0 : index
    %c0_58 = arith.constant 0 : index
    %80 = vector.load %arg19[%c0_57, %c0_58] : memref<18x8xf32, #tpu.memory_space<vmem>>, vector<8x8xf32>
    tpu.vector_store %arg19[%c0_57, %c0_58], %79 {strides = array<i32>} : memref<18x8xf32, #tpu.memory_space<vmem>>, vector<8x8xf32>,
    %c0_59 = arith.constant 0 : index
    %c0_60 = arith.constant 0 : index
    %81 = tpu.strided_load %arg19[%c0_59, %c0_60] {strides = array<i32: 2, 1>} : memref<18x8xf32, #tpu.memory_space<vmem>>, vector<4x8xf32>
    %c1_61 = arith.constant 1 : index
    %c0_62 = arith.constant 0 : index
    %82 = tpu.strided_load %arg19[%c1_61, %c0_62] {strides = array<i32: 2, 1>} : memref<18x8xf32, #tpu.memory_space<vmem>>, vector<4x8xf32>
    %83 = arith.maximumf %81, %82 : vector<4x8xf32>
    %cst_63 = arith.constant 0.000000e+00 : f32
    %84 = vector.broadcast %cst_63 : f32 to vector<1x8xf32>
    %c0_64 = arith.constant 0 : index
    %c0_65 = arith.constant 0 : index
    %85 = vector.load %arg19[%c0_64, %c0_65] : memref<18x8xf32, #tpu.memory_space<vmem>>, vector<1x8xf32>
    tpu.vector_store %arg19[%c0_64, %c0_65], %84 {strides = array<i32>} : memref<18x8xf32, #tpu.memory_space<vmem>>, vector<1x8xf32>,
    %c1_66 = arith.constant 1 : index
    %c0_67 = arith.constant 0 : index
    %86 = vector.load %arg19[%c1_66, %c0_67] : memref<18x8xf32, #tpu.memory_space<vmem>>, vector<4x8xf32>
    tpu.vector_store %arg19[%c1_66, %c0_67], %83 {strides = array<i32>} : memref<18x8xf32, #tpu.memory_space<vmem>>, vector<4x8xf32>,
    %cst_68 = arith.constant 0.000000e+00 : f32
    %87 = vector.broadcast %cst_68 : f32 to vector<1x8xf32>
    %c5 = arith.constant 5 : index
    %c0_69 = arith.constant 0 : index
    %88 = vector.load %arg19[%c5, %c0_69] : memref<18x8xf32, #tpu.memory_space<vmem>>, vector<1x8xf32>
    tpu.vector_store %arg19[%c5, %c0_69], %87 {strides = array<i32>} : memref<18x8xf32, #tpu.memory_space<vmem>>, vector<1x8xf32>,
    %c0_70 = arith.constant 0 : index
    %c0_71 = arith.constant 0 : index
    %89 = vector.load %arg19[%c0_70, %c0_71] : memref<18x8xf32, #tpu.memory_space<vmem>>, vector<4x8xf32>
    %c2_72 = arith.constant 2 : index
    %c0_73 = arith.constant 0 : index
    %90 = vector.load %arg19[%c2_72, %c0_73] : memref<18x8xf32, #tpu.memory_space<vmem>>, vector<4x8xf32>
    %91 = tpu.concatenate %89, %83, %90 in 1 : vector<4x8xf32>, vector<4x8xf32>, vector<4x8xf32> -> vector<4x24xf32>
    %c0_74 = arith.constant 0 : index
    %c0_75 = arith.constant 0 : index
    %92 = vector.load %arg20[%c0_74, %c0_75] : memref<8x24xf32, #tpu.memory_space<vmem>>, vector<4x24xf32>
    tpu.vector_store %arg20[%c0_74, %c0_75], %91 {strides = array<i32>} : memref<8x24xf32, #tpu.memory_space<vmem>>, vector<4x24xf32>,
    %c1_76 = arith.constant 1 : index
    %c0_77 = arith.constant 0 : index
    %c0_78 = arith.constant 0 : index
    %93 = vector.load %arg1[%c1_76, %c0_77, %c0_78] : memref<2x16x8xf32, #tpu.memory_space<vmem>>, vector<1x16x8xf32>
    %94 = vector.shape_cast %93 : vector<1x16x8xf32> to vector<16x8xf32>
    %cst_79 = arith.constant 0.000000e+00 : f32
    %95 = vector.broadcast %cst_79 : f32 to vector<1x8xf32>
    %c0_80 = arith.constant 0 : index
    %c0_81 = arith.constant 0 : index
    %96 = vector.load %arg19[%c0_80, %c0_81] : memref<18x8xf32, #tpu.memory_space<vmem>>, vector<1x8xf32>
    tpu.vector_store %arg19[%c0_80, %c0_81], %95 {strides = array<i32>} : memref<18x8xf32, #tpu.memory_space<vmem>>, vector<1x8xf32>,
    %c1_82 = arith.constant 1 : index
    %c0_83 = arith.constant 0 : index
    %97 = vector.load %arg19[%c1_82, %c0_83] : memref<18x8xf32, #tpu.memory_space<vmem>>, vector<16x8xf32>
    tpu.vector_store %arg19[%c1_82, %c0_83], %94 {strides = array<i32>} : memref<18x8xf32, #tpu.memory_space<vmem>>, vector<16x8xf32>,
    %cst_84 = arith.constant 0.000000e+00 : f32
    %98 = vector.broadcast %cst_84 : f32 to vector<1x8xf32>
    %c17_85 = arith.constant 17 : index
    %c0_86 = arith.constant 0 : index
    %99 = vector.load %arg19[%c17_85, %c0_86] : memref<18x8xf32, #tpu.memory_space<vmem>>, vector<1x8xf32>
    tpu.vector_store %arg19[%c17_85, %c0_86], %98 {strides = array<i32>} : memref<18x8xf32, #tpu.memory_space<vmem>>, vector<1x8xf32>,
    %c0_87 = arith.constant 0 : index
    %c0_88 = arith.constant 0 : index
    %100 = vector.load %arg19[%c0_87, %c0_88] : memref<18x8xf32, #tpu.memory_space<vmem>>, vector<16x8xf32>
    %c2_89 = arith.constant 2 : index
    %c0_90 = arith.constant 0 : index
    %101 = vector.load %arg19[%c2_89, %c0_90] : memref<18x8xf32, #tpu.memory_space<vmem>>, vector<16x8xf32>
    %102 = tpu.concatenate %100, %94, %101 in 1 : vector<16x8xf32>, vector<16x8xf32>, vector<16x8xf32> -> vector<16x24xf32>
    %c0_91 = arith.constant 0 : index
    %c0_92 = arith.constant 0 : index
    %103 = vector.load %arg2[%c0_91, %c0_92] : memref<24x8xf32, #tpu.memory_space<vmem>>, vector<24x8xf32>
    %cst_93 = arith.constant dense<0.000000e+00> : vector<16x8xf32>
    %104 = tpu.matmul %102, %103, %cst_93 {dimension_numbers = #tpu.dot_dimension_numbers<[1], [0], [0], [1], [0, 0, 1, 1], [], []>} : vector<16x24xf32>, vector<24x8xf32>, vector<16x8xf32> -> vector<16x8xf32>
    %c0_94 = arith.constant 0 : index
    %c0_95 = arith.constant 0 : index
    %105 = vector.load %arg3[%c0_94, %c0_95] : memref<1x8xf32, #tpu.memory_space<vmem>>, vector<1x8xf32>
    %106 = vector.broadcast %105 : vector<1x8xf32> to vector<16x8xf32>
    %107 = arith.addf %104, %106 : vector<16x8xf32>
    %108 = vector.shape_cast %107 : vector<16x8xf32> to vector<1x16x8xf32>
    %cst_96 = arith.constant dense<0.000000e+00> : vector<1xf32>
    %109 = vector.multi_reduction <add>, %108, %cst_96 [1, 2] : vector<1x16x8xf32> to vector<1xf32>
    %110 = vector.shape_cast %109 : vector<1xf32> to vector<1x1x1xf32>
    %111 = vector.extract %110[0, 0, 0] : f32 from vector<1x1x1xf32>
    %cst_97 = arith.constant 1.280000e+02 : f32
    %112 = arith.divf %111, %cst_97 : f32
    %113 = arith.mulf %107, %107 : vector<16x8xf32>
    %114 = vector.shape_cast %113 : vector<16x8xf32> to vector<1x16x8xf32>
    %cst_98 = arith.constant dense<0.000000e+00> : vector<1xf32>
    %115 = vector.multi_reduction <add>, %114, %cst_98 [1, 2] : vector<1x16x8xf32> to vector<1xf32>
    %116 = vector.shape_cast %115 : vector<1xf32> to vector<1x1x1xf32>
    %117 = vector.extract %116[0, 0, 0] : f32 from vector<1x1x1xf32>
    %cst_99 = arith.constant 1.280000e+02 : f32
    %118 = arith.divf %117, %cst_99 : f32
    %119 = arith.mulf %112, %112 : f32
    %120 = arith.subf %118, %119 : f32
    %cst_100 = arith.constant 0.000000e+00 : f32
    %121 = arith.maximumf %120, %cst_100 : f32
    %122 = vector.broadcast %112 : f32 to vector<16x8xf32>
    %123 = arith.subf %107, %122 : vector<16x8xf32>
    %cst_101 = arith.constant 9.99999974E-6 : f32
    %124 = arith.addf %121, %cst_101 : f32
    %125 = math.rsqrt %124 : f32
    %126 = vector.broadcast %125 : f32 to vector<16x8xf32>
    %127 = arith.mulf %123, %126 : vector<16x8xf32>
    %c0_102 = arith.constant 0 : index
    %c0_103 = arith.constant 0 : index
    %128 = vector.load %arg4[%c0_102, %c0_103] : memref<16x8xf32, #tpu.memory_space<vmem>>, vector<16x8xf32>
    %129 = arith.mulf %127, %128 : vector<16x8xf32>
    %c0_104 = arith.constant 0 : index
    %c0_105 = arith.constant 0 : index
    %130 = vector.load %arg5[%c0_104, %c0_105] : memref<16x8xf32, #tpu.memory_space<vmem>>, vector<16x8xf32>
    %131 = arith.addf %129, %130 : vector<16x8xf32>
    %c0_106 = arith.constant 0 : index
    %c0_107 = arith.constant 0 : index
    %132 = vector.load %arg19[%c0_106, %c0_107] : memref<18x8xf32, #tpu.memory_space<vmem>>, vector<16x8xf32>
    tpu.vector_store %arg19[%c0_106, %c0_107], %131 {strides = array<i32>} : memref<18x8xf32, #tpu.memory_space<vmem>>, vector<16x8xf32>,
    %c0_108 = arith.constant 0 : index
    %c0_109 = arith.constant 0 : index
    %133 = tpu.strided_load %arg19[%c0_108, %c0_109] {strides = array<i32: 2, 1>} : memref<18x8xf32, #tpu.memory_space<vmem>>, vector<8x8xf32>
    %c1_110 = arith.constant 1 : index
    %c0_111 = arith.constant 0 : index
    %134 = tpu.strided_load %arg19[%c1_110, %c0_111] {strides = array<i32: 2, 1>} : memref<18x8xf32, #tpu.memory_space<vmem>>, vector<8x8xf32>
    %135 = arith.maximumf %133, %134 : vector<8x8xf32>
    %cst_112 = arith.constant 0.000000e+00 : f32
    %136 = vector.broadcast %cst_112 : f32 to vector<1x8xf32>
    %c0_113 = arith.constant 0 : index
    %c0_114 = arith.constant 0 : index
    %137 = vector.load %arg19[%c0_113, %c0_114] : memref<18x8xf32, #tpu.memory_space<vmem>>, vector<1x8xf32>
    tpu.vector_store %arg19[%c0_113, %c0_114], %136 {strides = array<i32>} : memref<18x8xf32, #tpu.memory_space<vmem>>, vector<1x8xf32>,
    %c1_115 = arith.constant 1 : index
    %c0_116 = arith.constant 0 : index
    %138 = vector.load %arg19[%c1_115, %c0_116] : memref<18x8xf32, #tpu.memory_space<vmem>>, vector<8x8xf32>
    tpu.vector_store %arg19[%c1_115, %c0_116], %135 {strides = array<i32>} : memref<18x8xf32, #tpu.memory_space<vmem>>, vector<8x8xf32>,
    %cst_117 = arith.constant 0.000000e+00 : f32
    %139 = vector.broadcast %cst_117 : f32 to vector<1x8xf32>
    %c9_118 = arith.constant 9 : index
    %c0_119 = arith.constant 0 : index
    %140 = vector.load %arg19[%c9_118, %c0_119] : memref<18x8xf32, #tpu.memory_space<vmem>>, vector<1x8xf32>
    tpu.vector_store %arg19[%c9_118, %c0_119], %139 {strides = array<i32>} : memref<18x8xf32, #tpu.memory_space<vmem>>, vector<1x8xf32>,
    %c0_120 = arith.constant 0 : index
    %c0_121 = arith.constant 0 : index
    %141 = vector.load %arg19[%c0_120, %c0_121] : memref<18x8xf32, #tpu.memory_space<vmem>>, vector<8x8xf32>
    %c2_122 = arith.constant 2 : index
    %c0_123 = arith.constant 0 : index
    %142 = vector.load %arg19[%c2_122, %c0_123] : memref<18x8xf32, #tpu.memory_space<vmem>>, vector<8x8xf32>
    %143 = tpu.concatenate %141, %135, %142 in 1 : vector<8x8xf32>, vector<8x8xf32>, vector<8x8xf32> -> vector<8x24xf32>
    %c0_124 = arith.constant 0 : index
    %c0_125 = arith.constant 0 : index
    %144 = vector.load %arg6[%c0_124, %c0_125] : memref<24x8xf32, #tpu.memory_space<vmem>>, vector<24x8xf32>
    %cst_126 = arith.constant dense<0.000000e+00> : vector<8x8xf32>
    %145 = tpu.matmul %143, %144, %cst_126 {dimension_numbers = #tpu.dot_dimension_numbers<[1], [0], [0], [1], [0, 0, 1, 1], [], []>} : vector<8x24xf32>, vector<24x8xf32>, vector<8x8xf32> -> vector<8x8xf32>
    %c0_127 = arith.constant 0 : index
    %c0_128 = arith.constant 0 : index
    %146 = vector.load %arg7[%c0_127, %c0_128] : memref<1x8xf32, #tpu.memory_space<vmem>>, vector<1x8xf32>
    %147 = vector.broadcast %146 : vector<1x8xf32> to vector<8x8xf32>
    %148 = arith.addf %145, %147 : vector<8x8xf32>
    %149 = vector.shape_cast %148 : vector<8x8xf32> to vector<1x8x8xf32>
    %cst_129 = arith.constant dense<0.000000e+00> : vector<1xf32>
    %150 = vector.multi_reduction <add>, %149, %cst_129 [1, 2] : vector<1x8x8xf32> to vector<1xf32>
    %151 = vector.shape_cast %150 : vector<1xf32> to vector<1x1x1xf32>
    %152 = vector.extract %151[0, 0, 0] : f32 from vector<1x1x1xf32>
    %cst_130 = arith.constant 6.400000e+01 : f32
    %153 = arith.divf %152, %cst_130 : f32
    %154 = arith.mulf %148, %148 : vector<8x8xf32>
    %155 = vector.shape_cast %154 : vector<8x8xf32> to vector<1x8x8xf32>
    %cst_131 = arith.constant dense<0.000000e+00> : vector<1xf32>
    %156 = vector.multi_reduction <add>, %155, %cst_131 [1, 2] : vector<1x8x8xf32> to vector<1xf32>
    %157 = vector.shape_cast %156 : vector<1xf32> to vector<1x1x1xf32>
    %158 = vector.extract %157[0, 0, 0] : f32 from vector<1x1x1xf32>
    %cst_132 = arith.constant 6.400000e+01 : f32
    %159 = arith.divf %158, %cst_132 : f32
    %160 = arith.mulf %153, %153 : f32
    %161 = arith.subf %159, %160 : f32
    %cst_133 = arith.constant 0.000000e+00 : f32
    %162 = arith.maximumf %161, %cst_133 : f32
    %163 = vector.broadcast %153 : f32 to vector<8x8xf32>
    %164 = arith.subf %148, %163 : vector<8x8xf32>
    %cst_134 = arith.constant 9.99999974E-6 : f32
    %165 = arith.addf %162, %cst_134 : f32
    %166 = math.rsqrt %165 : f32
    %167 = vector.broadcast %166 : f32 to vector<8x8xf32>
    %168 = arith.mulf %164, %167 : vector<8x8xf32>
    %c0_135 = arith.constant 0 : index
    %c0_136 = arith.constant 0 : index
    %169 = vector.load %arg8[%c0_135, %c0_136] : memref<8x8xf32, #tpu.memory_space<vmem>>, vector<8x8xf32>
    %170 = arith.mulf %168, %169 : vector<8x8xf32>
    %c0_137 = arith.constant 0 : index
    %c0_138 = arith.constant 0 : index
    %171 = vector.load %arg9[%c0_137, %c0_138] : memref<8x8xf32, #tpu.memory_space<vmem>>, vector<8x8xf32>
    %172 = arith.addf %170, %171 : vector<8x8xf32>
    %c0_139 = arith.constant 0 : index
    %c0_140 = arith.constant 0 : index
    %173 = vector.load %arg19[%c0_139, %c0_140] : memref<18x8xf32, #tpu.memory_space<vmem>>, vector<8x8xf32>
    tpu.vector_store %arg19[%c0_139, %c0_140], %172 {strides = array<i32>} : memref<18x8xf32, #tpu.memory_space<vmem>>, vector<8x8xf32>,
    %c0_141 = arith.constant 0 : index
    %c0_142 = arith.constant 0 : index
    %174 = tpu.strided_load %arg19[%c0_141, %c0_142] {strides = array<i32: 2, 1>} : memref<18x8xf32, #tpu.memory_space<vmem>>, vector<4x8xf32>
    %c1_143 = arith.constant 1 : index
    %c0_144 = arith.constant 0 : index
    %175 = tpu.strided_load %arg19[%c1_143, %c0_144] {strides = array<i32: 2, 1>} : memref<18x8xf32, #tpu.memory_space<vmem>>, vector<4x8xf32>
    %176 = arith.maximumf %174, %175 : vector<4x8xf32>
    %cst_145 = arith.constant 0.000000e+00 : f32
    %177 = vector.broadcast %cst_145 : f32 to vector<1x8xf32>
    %c0_146 = arith.constant 0 : index
    %c0_147 = arith.constant 0 : index
    %178 = vector.load %arg19[%c0_146, %c0_147] : memref<18x8xf32, #tpu.memory_space<vmem>>, vector<1x8xf32>
    tpu.vector_store %arg19[%c0_146, %c0_147], %177 {strides = array<i32>} : memref<18x8xf32, #tpu.memory_space<vmem>>, vector<1x8xf32>,
    %c1_148 = arith.constant 1 : index
    %c0_149 = arith.constant 0 : index
    %179 = vector.load %arg19[%c1_148, %c0_149] : memref<18x8xf32, #tpu.memory_space<vmem>>, vector<4x8xf32>
    tpu.vector_store %arg19[%c1_148, %c0_149], %176 {strides = array<i32>} : memref<18x8xf32, #tpu.memory_space<vmem>>, vector<4x8xf32>,
    %cst_150 = arith.constant 0.000000e+00 : f32
    %180 = vector.broadcast %cst_150 : f32 to vector<1x8xf32>
    %c5_151 = arith.constant 5 : index
    %c0_152 = arith.constant 0 : index
    %181 = vector.load %arg19[%c5_151, %c0_152] : memref<18x8xf32, #tpu.memory_space<vmem>>, vector<1x8xf32>
    tpu.vector_store %arg19[%c5_151, %c0_152], %180 {strides = array<i32>} : memref<18x8xf32, #tpu.memory_space<vmem>>, vector<1x8xf32>,
    %c0_153 = arith.constant 0 : index
    %c0_154 = arith.constant 0 : index
    %182 = vector.load %arg19[%c0_153, %c0_154] : memref<18x8xf32, #tpu.memory_space<vmem>>, vector<4x8xf32>
    %c2_155 = arith.constant 2 : index
    %c0_156 = arith.constant 0 : index
    %183 = vector.load %arg19[%c2_155, %c0_156] : memref<18x8xf32, #tpu.memory_space<vmem>>, vector<4x8xf32>
    %184 = tpu.concatenate %182, %176, %183 in 1 : vector<4x8xf32>, vector<4x8xf32>, vector<4x8xf32> -> vector<4x24xf32>
    %c4 = arith.constant 4 : index
    %c0_157 = arith.constant 0 : index
    %185 = vector.load %arg20[%c4, %c0_157] : memref<8x24xf32, #tpu.memory_space<vmem>>, vector<4x24xf32>
    tpu.vector_store %arg20[%c4, %c0_157], %184 {strides = array<i32>} : memref<8x24xf32, #tpu.memory_space<vmem>>, vector<4x24xf32>,
    %c0_158 = arith.constant 0 : index
    %c0_159 = arith.constant 0 : index
    %186 = vector.load %arg20[%c0_158, %c0_159] : memref<8x24xf32, #tpu.memory_space<vmem>>, vector<8x24xf32>
    %187 = arith.truncf %186 : vector<8x24xf32> to vector<8x24xbf16>
    %c0_160 = arith.constant 0 : index
    %c0_161 = arith.constant 0 : index
    %188 = vector.load %arg10[%c0_160, %c0_161] : memref<24x64xbf16, #tpu.memory_space<vmem>>, vector<24x64xbf16>
    %cst_162 = arith.constant dense<0.000000e+00> : vector<8x64xf32>
    %189 = tpu.matmul %187, %188, %cst_162 {dimension_numbers = #tpu.dot_dimension_numbers<[1], [0], [0], [1], [0, 0, 1, 1], [], []>} : vector<8x24xbf16>, vector<24x64xbf16>, vector<8x64xf32> -> vector<8x64xf32>
    %c0_163 = arith.constant 0 : index
    %c0_164 = arith.constant 0 : index
    %190 = vector.load %arg21[%c0_163, %c0_164] : memref<8x64xf32, #tpu.memory_space<vmem>>, vector<8x64xf32>
    tpu.vector_store %arg21[%c0_163, %c0_164], %189 {strides = array<i32>} : memref<8x64xf32, #tpu.memory_space<vmem>>, vector<8x64xf32>,
    %c0_165 = arith.constant 0 : index
    %c0_166 = arith.constant 0 : index
    %191 = vector.load %arg21[%c0_165, %c0_166] : memref<8x64xf32, #tpu.memory_space<vmem>>, vector<4x64xf32>
    %cst_167 = arith.constant dense<0xFF800000> : vector<64xf32>
    %192 = vector.multi_reduction <maximumf>, %191, %cst_167 [0] : vector<4x64xf32> to vector<64xf32>
    %193 = vector.shape_cast %192 : vector<64xf32> to vector<1x64xf32>
    %c0_168 = arith.constant 0 : index
    %c0_169 = arith.constant 0 : index
    %194 = vector.load %arg22[%c0_168, %c0_169] : memref<2x64xf32, #tpu.memory_space<vmem>>, vector<1x64xf32>
    tpu.vector_store %arg22[%c0_168, %c0_169], %193 {strides = array<i32>} : memref<2x64xf32, #tpu.memory_space<vmem>>, vector<1x64xf32>,
    %c4_170 = arith.constant 4 : index
    %c0_171 = arith.constant 0 : index
    %195 = vector.load %arg21[%c4_170, %c0_171] : memref<8x64xf32, #tpu.memory_space<vmem>>, vector<4x64xf32>
    %cst_172 = arith.constant dense<0xFF800000> : vector<64xf32>
    %196 = vector.multi_reduction <maximumf>, %195, %cst_172 [0] : vector<4x64xf32> to vector<64xf32>
    %197 = vector.shape_cast %196 : vector<64xf32> to vector<1x64xf32>
    %c1_173 = arith.constant 1 : index
    %c0_174 = arith.constant 0 : index
    %198 = vector.load %arg22[%c1_173, %c0_174] : memref<2x64xf32, #tpu.memory_space<vmem>>, vector<1x64xf32>
    tpu.vector_store %arg22[%c1_173, %c0_174], %197 {strides = array<i32>} : memref<2x64xf32, #tpu.memory_space<vmem>>, vector<1x64xf32>,
    %c0_175 = arith.constant 0 : index
    %c0_176 = arith.constant 0 : index
    %199 = vector.load %arg22[%c0_175, %c0_176] : memref<2x64xf32, #tpu.memory_space<vmem>>, vector<2x64xf32>
    %c0_177 = arith.constant 0 : index
    %c0_178 = arith.constant 0 : index
    %200 = vector.load %arg11[%c0_177, %c0_178] : memref<1x64xf32, #tpu.memory_space<vmem>>, vector<1x64xf32>
    %201 = vector.broadcast %200 : vector<1x64xf32> to vector<2x64xf32>
    %202 = arith.addf %199, %201 : vector<2x64xf32>
    %203 = arith.truncf %202 : vector<2x64xf32> to vector<2x64xbf16>
    %c0_179 = arith.constant 0 : index
    %c0_180 = arith.constant 0 : index
    %204 = vector.load %arg12[%c0_179, %c0_180] : memref<64x32xbf16, #tpu.memory_space<vmem>>, vector<64x32xbf16>
    %cst_181 = arith.constant dense<0.000000e+00> : vector<2x32xf32>
    %205 = tpu.matmul %203, %204, %cst_181 {dimension_numbers = #tpu.dot_dimension_numbers<[1], [0], [0], [1], [0, 0, 1, 1], [], []>} : vector<2x64xbf16>, vector<64x32xbf16>, vector<2x32xf32> -> vector<2x32xf32>
    %c0_182 = arith.constant 0 : index
    %c0_183 = arith.constant 0 : index
    %206 = vector.load %arg13[%c0_182, %c0_183] : memref<1x32xf32, #tpu.memory_space<vmem>>, vector<1x32xf32>
    %207 = vector.broadcast %206 : vector<1x32xf32> to vector<2x32xf32>
    %208 = arith.addf %205, %207 : vector<2x32xf32>
    %209 = arith.truncf %208 : vector<2x32xf32> to vector<2x32xbf16>
    %c0_184 = arith.constant 0 : index
    %c0_185 = arith.constant 0 : index
    %210 = vector.load %arg14[%c0_184, %c0_185] : memref<32x32xbf16, #tpu.memory_space<vmem>>, vector<32x32xbf16>
    %cst_186 = arith.constant dense<0.000000e+00> : vector<2x32xf32>
    %211 = tpu.matmul %209, %210, %cst_186 {dimension_numbers = #tpu.dot_dimension_numbers<[1], [0], [0], [1], [0, 0, 1, 1], [], []>} : vector<2x32xbf16>, vector<32x32xbf16>, vector<2x32xf32> -> vector<2x32xf32>
    %c0_187 = arith.constant 0 : index
    %c0_188 = arith.constant 0 : index
    %212 = vector.load %arg15[%c0_187, %c0_188] : memref<1x32xf32, #tpu.memory_space<vmem>>, vector<1x32xf32>
    %213 = vector.broadcast %212 : vector<1x32xf32> to vector<2x32xf32>
    %214 = arith.addf %211, %213 : vector<2x32xf32>
    %215 = arith.truncf %214 : vector<2x32xf32> to vector<2x32xbf16>
    %c0_189 = arith.constant 0 : index
    %c0_190 = arith.constant 0 : index
    %216 = vector.load %arg16[%c0_189, %c0_190] : memref<32x2xbf16, #tpu.memory_space<vmem>>, vector<32x2xbf16>
    %cst_191 = arith.constant dense<0.000000e+00> : vector<2x2xf32>
    %217 = tpu.matmul %215, %216, %cst_191 {dimension_numbers = #tpu.dot_dimension_numbers<[1], [0], [0], [1], [0, 0, 1, 1], [], []>} : vector<2x32xbf16>, vector<32x2xbf16>, vector<2x2xf32> -> vector<2x2xf32>
    %c0_192 = arith.constant 0 : index
    %c0_193 = arith.constant 0 : index
    %218 = vector.load %arg17[%c0_192, %c0_193] : memref<1x2xf32, #tpu.memory_space<vmem>>, vector<1x2xf32>
    %219 = vector.broadcast %218 : vector<1x2xf32> to vector<2x2xf32>
    %220 = arith.addf %217, %219 : vector<2x2xf32>
    %221 = tpu.iota {dimensions = array<i32: 1>} : vector<2x2xi32>
    %c1_i32 = arith.constant 1 : i32
    %222 = vector.broadcast %c1_i32 : i32 to vector<2x2xi32>
    %223 = arith.cmpi eq, %221, %222 : vector<2x2xi32>
    %224 = arith.negf %220 : vector<2x2xf32>
    %225 = math.exp %224 : vector<2x2xf32>
    %cst_194 = arith.constant 1.000000e+00 : f32
    %226 = vector.broadcast %cst_194 : f32 to vector<2x2xf32>
    %227 = arith.addf %226, %225 : vector<2x2xf32>
    %228 = arith.divf %226, %227 : vector<2x2xf32>
    %229 = arith.select %223, %228, %220 : vector<2x2xi1>, vector<2x2xf32>
    %c0_195 = arith.constant 0 : index
    %c0_196 = arith.constant 0 : index
    %230 = vector.load %arg18[%c0_195, %c0_196] : memref<2x2xf32, #tpu.memory_space<vmem>>, vector<2x2xf32>
    tpu.vector_store %arg18[%c0_195, %c0_196], %229 {strides = array<i32>} : memref<2x2xf32, #tpu.memory_space<vmem>>, vector<2x2xf32>,
    return
  }
  func.func @transform_0(%arg0: i32) -> (i32, i32, i32) {
    %c0_i32 = arith.constant 0 : i32
    %c0_i32_0 = arith.constant 0 : i32
    %c0_i32_1 = arith.constant 0 : i32
    return %arg0, %c0_i32, %c0_i32_0 : i32, i32, i32
  }
  func.func @transform_1(%arg0: i32) -> (i32, i32) {
    %c0_i32 = arith.constant 0 : i32
    %c0_i32_0 = arith.constant 0 : i32
    %c0_i32_1 = arith.constant 0 : i32
    return %c0_i32, %c0_i32_0 : i32, i32
  }
  func.func @transform_2(%arg0: i32) -> (i32, i32) {
    %c0_i32 = arith.constant 0 : i32
    %c0_i32_0 = arith.constant 0 : i32
    %c0_i32_1 = arith.constant 0 : i32
    return %c0_i32, %c0_i32_0 : i32, i32
  }
  func.func @transform_3(%arg0: i32) -> (i32, i32) {
    %c0_i32 = arith.constant 0 : i32
    %c0_i32_0 = arith.constant 0 : i32
    %c0_i32_1 = arith.constant 0 : i32
    return %c0_i32, %c0_i32_0 : i32, i32
  }
  func.func @transform_4(%arg0: i32) -> (i32, i32) {
    %c0_i32 = arith.constant 0 : i32
    %c0_i32_0 = arith.constant 0 : i32
    %c0_i32_1 = arith.constant 0 : i32
    return %c0_i32, %c0_i32_0 : i32, i32
  }
  func.func @transform_5(%arg0: i32) -> (i32, i32) {
    %c0_i32 = arith.constant 0 : i32
    %c0_i32_0 = arith.constant 0 : i32
    %c0_i32_1 = arith.constant 0 : i32
    return %c0_i32, %c0_i32_0 : i32, i32
  }
  func.func @transform_6(%arg0: i32) -> (i32, i32) {
    %c0_i32 = arith.constant 0 : i32
    %c0_i32_0 = arith.constant 0 : i32
    %c0_i32_1 = arith.constant 0 : i32
    return %c0_i32, %c0_i32_0 : i32, i32
  }
  func.func @transform_7(%arg0: i32) -> (i32, i32) {
    %c0_i32 = arith.constant 0 : i32
    %c0_i32_0 = arith.constant 0 : i32
    %c0_i32_1 = arith.constant 0 : i32
    return %c0_i32, %c0_i32_0 : i32, i32
  }
  func.func @transform_8(%arg0: i32) -> (i32, i32) {
    %c0_i32 = arith.constant 0 : i32
    %c0_i32_0 = arith.constant 0 : i32
    %c0_i32_1 = arith.constant 0 : i32
    return %c0_i32, %c0_i32_0 : i32, i32
  }
  func.func @transform_9(%arg0: i32) -> (i32, i32) {
    %c0_i32 = arith.constant 0 : i32
    %c0_i32_0 = arith.constant 0 : i32
    %c0_i32_1 = arith.constant 0 : i32
    return %c0_i32, %c0_i32_0 : i32, i32
  }
  func.func @transform_10(%arg0: i32) -> (i32, i32) {
    %c0_i32 = arith.constant 0 : i32
    %c0_i32_0 = arith.constant 0 : i32
    %c0_i32_1 = arith.constant 0 : i32
    return %c0_i32, %c0_i32_0 : i32, i32
  }
  func.func @transform_11(%arg0: i32) -> (i32, i32) {
    %c0_i32 = arith.constant 0 : i32
    %c0_i32_0 = arith.constant 0 : i32
    %c0_i32_1 = arith.constant 0 : i32
    return %c0_i32, %c0_i32_0 : i32, i32
  }
  func.func @transform_12(%arg0: i32) -> (i32, i32) {
    %c0_i32 = arith.constant 0 : i32
    %c0_i32_0 = arith.constant 0 : i32
    %c0_i32_1 = arith.constant 0 : i32
    return %c0_i32, %c0_i32_0 : i32, i32
  }
  func.func @transform_13(%arg0: i32) -> (i32, i32) {
    %c0_i32 = arith.constant 0 : i32
    %c0_i32_0 = arith.constant 0 : i32
    %c0_i32_1 = arith.constant 0 : i32
    return %c0_i32, %c0_i32_0 : i32, i32
  }
  func.func @transform_14(%arg0: i32) -> (i32, i32) {
    %c0_i32 = arith.constant 0 : i32
    %c0_i32_0 = arith.constant 0 : i32
    %c0_i32_1 = arith.constant 0 : i32
    return %c0_i32, %c0_i32_0 : i32, i32
  }
  func.func @transform_15(%arg0: i32) -> (i32, i32) {
    %c0_i32 = arith.constant 0 : i32
    %c0_i32_0 = arith.constant 0 : i32
    %c0_i32_1 = arith.constant 0 : i32
    return %c0_i32, %c0_i32_0 : i32, i32
  }
  func.func @transform_16(%arg0: i32) -> (i32, i32) {
    %c0_i32 = arith.constant 0 : i32
    %c0_i32_0 = arith.constant 0 : i32
    %c0_i32_1 = arith.constant 0 : i32
    return %c0_i32, %c0_i32_0 : i32, i32
  }
  func.func @transform_17(%arg0: i32) -> (i32, i32) {
    %c0_i32 = arith.constant 0 : i32
    %c0_i32_0 = arith.constant 0 : i32
    return %arg0, %c0_i32 : i32, i32
  }
}

</mosaic_0001>

<llo_original>
// kernel: cnn_model_forward.1
$region0: #{cnn_model_forward.1}
  #allocation0 [shape = 'u32[]', space=smem, size = 0x4, offset = 0x4, fixed_abs, tag = 'smem constant byte address 0x4 - core index']
  #allocation1 [shape = 'u32[144,128]{1,0:T(1,128)}', space=vmem, size = 0x12000, scoped, tag = 'internal scratch']
  #allocation2 [shape = 'f32[18,8]{1,0:T(8,128)}', space=vmem, size = 0x3000, scoped, tag = 'scratch operand']
  #allocation3 [shape = 'f32[8,24]{1,0:T(8,128)}', space=vmem, size = 0x1000, scoped, tag = 'scratch operand']
  #allocation4 [shape = 'f32[8,64]{1,0:T(8,128)}', space=vmem, size = 0x1000, scoped, tag = 'scratch operand']
  #allocation5 [shape = 'f32[2,64]{1,0:T(2,128)}', space=vmem, size = 0x400, scoped, tag = 'scratch operand']
  %s0 = inlined_call_operand.vmem [shape: f32[2,16,8], index: 0, kind: input, shape index: {}]
  %s1 = inlined_call_operand.vmem [shape: f32[24,8], index: 1, kind: input, shape index: {}]
  %s2 = inlined_call_operand.vmem [shape: f32[1,8], index: 2, kind: input, shape index: {}]
  %s3 = inlined_call_operand.vmem [shape: f32[16,8], index: 3, kind: input, shape index: {}]
  %s4 = inlined_call_operand.vmem [shape: f32[16,8], index: 4, kind: input, shape index: {}]
  %s5 = inlined_call_operand.vmem [shape: f32[24,8], index: 5, kind: input, shape index: {}]
  %s6 = inlined_call_operand.vmem [shape: f32[1,8], index: 6, kind: input, shape index: {}]
  %s7 = inlined_call_operand.vmem [shape: f32[8,8], index: 7, kind: input, shape index: {}]
  %s8 = inlined_call_operand.vmem [shape: f32[8,8], index: 8, kind: input, shape index: {}]
  %s9 = inlined_call_operand.vmem [shape: bf16[24,64], index: 9, kind: input, shape index: {}]
  %s10 = inlined_call_operand.vmem [shape: f32[1,64], index: 10, kind: input, shape index: {}]
  %s11 = inlined_call_operand.vmem [shape: bf16[64,32], index: 11, kind: input, shape index: {}]
  %s12 = inlined_call_operand.vmem [shape: f32[1,32], index: 12, kind: input, shape index: {}]
  %s13 = inlined_call_operand.vmem [shape: bf16[32,32], index: 13, kind: input, shape index: {}]
  %s14 = inlined_call_operand.vmem [shape: f32[1,32], index: 14, kind: input, shape index: {}]
  %s15 = inlined_call_operand.vmem [shape: bf16[32,2], index: 15, kind: input, shape index: {}]
  %s16 = inlined_call_operand.vmem [shape: f32[1,2], index: 16, kind: input, shape index: {}]
  %s17 = inlined_call_operand.vmem [shape: f32[2,2], index: 17, kind: output, shape index: {}]
  %s18 = sld [smem:[#allocation0]]
  $region78: #{cnn_model_forward.1} parent=0
    _
  %s20 = ssub.s32 1, %s18
  %s21 = scalar_select 0, %s20, %s18
  // Predicated region
  $region2: #{cnn_model_forward.1} parent=0 // pred_check
    _
  $region3: #{cnn_model_forward.1} parent=0 // pred_check_branch
    %23 = sbr.rel (0) target = $region5
  $region4: #{cnn_model_forward.1} parent=0 // pred_region
    _
  $region5: #{cnn_model_forward.1} parent=0 // pred_fallthru
    _
  // Predicated region
  $region6: #{cnn_model_forward.1} parent=0 // pred_check
    _
  $region7: #{cnn_model_forward.1} parent=0 // pred_check_branch
    %25 = sbr.rel (0) target = $region9
  $region8: #{cnn_model_forward.1} parent=0 // pred_region
    _
  $region9: #{cnn_model_forward.1} parent=0 // pred_fallthru
    _
  // Predicated region
  $region10: #{cnn_model_forward.1} parent=0 // pred_check
    _
  $region11: #{cnn_model_forward.1} parent=0 // pred_check_branch
    %27 = sbr.rel (0) target = $region13
  $region12: #{cnn_model_forward.1} parent=0 // pred_region
    _
  $region13: #{cnn_model_forward.1} parent=0 // pred_fallthru
    _
  // Predicated region
  $region14: #{cnn_model_forward.1} parent=0 // pred_check
    _
  $region15: #{cnn_model_forward.1} parent=0 // pred_check_branch
    %29 = sbr.rel (0) target = $region17
  $region16: #{cnn_model_forward.1} parent=0 // pred_region
    _
  $region17: #{cnn_model_forward.1} parent=0 // pred_fallthru
    _
  // Predicated region
  $region18: #{cnn_model_forward.1} parent=0 // pred_check
    _
  $region19: #{cnn_model_forward.1} parent=0 // pred_check_branch
    %31 = sbr.rel (0) target = $region21
  $region20: #{cnn_model_forward.1} parent=0 // pred_region
    _
  $region21: #{cnn_model_forward.1} parent=0 // pred_fallthru
    _
  // Predicated region
  $region22: #{cnn_model_forward.1} parent=0 // pred_check
    _
  $region23: #{cnn_model_forward.1} parent=0 // pred_check_branch
    %33 = sbr.rel (0) target = $region25
  $region24: #{cnn_model_forward.1} parent=0 // pred_region
    _
  $region25: #{cnn_model_forward.1} parent=0 // pred_fallthru
    _
  // Predicated region
  $region26: #{cnn_model_forward.1} parent=0 // pred_check
    _
  $region27: #{cnn_model_forward.1} parent=0 // pred_check_branch
    %35 = sbr.rel (0) target = $region29
  $region28: #{cnn_model_forward.1} parent=0 // pred_region
    _
  $region29: #{cnn_model_forward.1} parent=0 // pred_fallthru
    _
  // Predicated region
  $region30: #{cnn_model_forward.1} parent=0 // pred_check
    _
  $region31: #{cnn_model_forward.1} parent=0 // pred_check_branch
    %37 = sbr.rel (0) target = $region33
  $region32: #{cnn_model_forward.1} parent=0 // pred_region
    _
  $region33: #{cnn_model_forward.1} parent=0 // pred_fallthru
    _
  // Predicated region
  $region34: #{cnn_model_forward.1} parent=0 // pred_check
    _
  $region35: #{cnn_model_forward.1} parent=0 // pred_check_branch
    %39 = sbr.rel (0) target = $region37
  $region36: #{cnn_model_forward.1} parent=0 // pred_region
    _
  $region37: #{cnn_model_forward.1} parent=0 // pred_fallthru
    _
  // Predicated region
  $region38: #{cnn_model_forward.1} parent=0 // pred_check
    _
  $region39: #{cnn_model_forward.1} parent=0 // pred_check_branch
    %41 = sbr.rel (0) target = $region41
  $region40: #{cnn_model_forward.1} parent=0 // pred_region
    _
  $region41: #{cnn_model_forward.1} parent=0 // pred_fallthru
    _
  // Predicated region
  $region42: #{cnn_model_forward.1} parent=0 // pred_check
    _
  $region43: #{cnn_model_forward.1} parent=0 // pred_check_branch
    %43 = sbr.rel (0) target = $region45
  $region44: #{cnn_model_forward.1} parent=0 // pred_region
    _
  $region45: #{cnn_model_forward.1} parent=0 // pred_fallthru
    _
  // Predicated region
  $region46: #{cnn_model_forward.1} parent=0 // pred_check
    _
  $region47: #{cnn_model_forward.1} parent=0 // pred_check_branch
    %45 = sbr.rel (0) target = $region49
  $region48: #{cnn_model_forward.1} parent=0 // pred_region
    _
  $region49: #{cnn_model_forward.1} parent=0 // pred_fallthru
    _
  // Predicated region
  $region50: #{cnn_model_forward.1} parent=0 // pred_check
    _
  $region51: #{cnn_model_forward.1} parent=0 // pred_check_branch
    %47 = sbr.rel (0) target = $region53
  $region52: #{cnn_model_forward.1} parent=0 // pred_region
    _
  $region53: #{cnn_model_forward.1} parent=0 // pred_fallthru
    _
  // Predicated region
  $region54: #{cnn_model_forward.1} parent=0 // pred_check
    _
  $region55: #{cnn_model_forward.1} parent=0 // pred_check_branch
    %49 = sbr.rel (0) target = $region57
  $region56: #{cnn_model_forward.1} parent=0 // pred_region
    _
  $region57: #{cnn_model_forward.1} parent=0 // pred_fallthru
    _
  // Predicated region
  $region58: #{cnn_model_forward.1} parent=0 // pred_check
    _
  $region59: #{cnn_model_forward.1} parent=0 // pred_check_branch
    %51 = sbr.rel (0) target = $region61
  $region60: #{cnn_model_forward.1} parent=0 // pred_region
    _
  $region61: #{cnn_model_forward.1} parent=0 // pred_fallthru
    _
  // Predicated region
  $region62: #{cnn_model_forward.1} parent=0 // pred_check
    _
  $region63: #{cnn_model_forward.1} parent=0 // pred_check_branch
    %53 = sbr.rel (0) target = $region65
  $region64: #{cnn_model_forward.1} parent=0 // pred_region
    _
  $region65: #{cnn_model_forward.1} parent=0 // pred_fallthru
    _
  // Predicated region
  $region66: #{cnn_model_forward.1} parent=0 // pred_check
    _
  $region67: #{cnn_model_forward.1} parent=0 // pred_check_branch
    %55 = sbr.rel (0) target = $region69
  $region68: #{cnn_model_forward.1} parent=0 // pred_region
    _
  $region69: #{cnn_model_forward.1} parent=0 // pred_fallthru
    _
  %v57 = vld [vmem:[%s0] sm:$0xff]
  %v58 = vld [vmem:[%s0 + $0x8] sm:$0xff]
  %vm59 = vcmask 57344
  %60 = vst.msk [vmem:[#allocation2] sm:$0x1] %vm59, 0.0
  %vm61 = vcmask 64512
  %62 = vst.msk [vmem:[#allocation2 + $0x1] sm:$0xff] %vm61, %v57
  %63 = vst.msk [vmem:[#allocation2 + $0x9] sm:$0xff] %vm61, %v58
  %64 = vst.msk [vmem:[#allocation2 + $0x11] sm:$0x1] %vm59, 0.0
  %v65 = vld [vmem:[#allocation2] sm:$0xff]
  %v66 = vld [vmem:[#allocation2 + $0x8] sm:$0xff]
  %v67 = vld [vmem:[#allocation2 + $0x2] sm:$0xff]
  %v68 = vld [vmem:[#allocation2 + $0xa] sm:$0xff]
  %71 = vrot.lane.b32.xlu0 %v57, 8
  %v72 = vpop.permute.xlu0 %71
  %73 = vrot.lane.b32.xlu0 %v58, 8
  %v74 = vpop.permute.xlu0 %73
  %79 = vrot.lane.b32.xlu0 %v67, 16
  %v80 = vpop.permute.xlu0 %79
  %81 = vrot.lane.b32.xlu0 %v68, 16
  %v82 = vpop.permute.xlu0 %81
  %v85 = vsel %vm61, %v65, %v72
  %v86 = vsel %vm61, %v66, %v74
  %vm87 = vcmask 130048
  %v88 = vsel %vm87, %v85, %v80
  %v89 = vsel %vm87, %v86, %v82
  %v90 = vld [vmem:[%s1] sm:$0xff]
  %v91 = vld [vmem:[%s1 + $0x8] sm:$0xff]
  %v92 = vld [vmem:[%s1 + $0x10] sm:$0xff]
  %v93 = vld [vmem:[%s2] sm:$0x1]
  %v95 = vlaneseq
  %v96 = vshrl.u32 %v95, 7
  %v97 = vsub.s32 0, %v96
  %v98 = vrot.slane %v93, %v97
  %vm100 = vcmask 195584
  %v102 = vsel %vm100, %v88, 0
  %v105 = vsel %vm100, %v89, 0
  %107 = vmatprep.subr.mxu0 0.0
  %108 = vmatpush1.msra.mxu0 %v90
  %109 = vmatprep.subr.mxu0 0.0
  %110 = vmatpush1.msra.mxu0 %v91
  %111 = vmatprep.subr.mxu0 0.0
  %112 = vmatpush1.msra.mxu0 %v92
  %113 = vmatprep.subr.mxu0 0.0
  %114 = vmatpush1.msra.mxu0 0.0
  %115 = vmatprep.subr.mxu0 0.0
  %116 = vmatpush1.msra.mxu0 0.0
  %117 = vmatprep.subr.mxu0 0.0
  %118 = vmatpush1.msra.mxu0 0.0
  %119 = vmatprep.subr.mxu0 0.0
  %120 = vmatpush1.msra.mxu0 0.0
  %121 = vmatprep.subr.mxu0 0.0
  %122 = vmatpush1.msra.mxu0 0.0
  %123 = vmatprep.subr.mxu0 0.0
  %124 = vmatpush1.msra.mxu0 0.0
  %125 = vmatprep.subr.mxu0 0.0
  %126 = vmatpush1.msra.mxu0 0.0
  %127 = vmatprep.subr.mxu0 0.0
  %128 = vmatpush1.msra.mxu0 0.0
  %129 = vmatprep.subr.mxu0 0.0
  %130 = vmatpush1.msra.mxu0 0.0
  %131 = vmatprep.subr.mxu0 0.0
  %132 = vmatpush1.msra.mxu0 0.0
  %133 = vmatprep.subr.mxu0 0.0
  %134 = vmatpush1.msra.mxu0 0.0
  %135 = vmatprep.subr.mxu0 0.0
  %136 = vmatpush1.msra.mxu0 0.0
  %137 = vmatprep.subr.mxu0 0.0
  %138 = vmatpush1.msra.mxu0 0.0
  %139 = vmatprep.subr.mxu0 0.0
  %140 = vmatpush1.msra.mxu0 0.0
  %141 = vmatprep.subr.mxu0 0.0
  %142 = vmatpush1.msra.mxu0 0.0
  %143 = vmatprep.subr.mxu0 0.0
  %144 = vmatpush1.msra.mxu0 0.0
  %145 = vmatprep.subr.mxu0 0.0
  %146 = vmatpush1.msra.mxu0 0.0
  %147 = vmatprep.subr.mxu0 0.0
  %148 = vmatpush1.msra.mxu0 0.0
  %149 = vmatprep.subr.mxu0 0.0
  %150 = vmatpush1.msra.mxu0 0.0
  %151 = vmatprep.subr.mxu0 0.0
  %152 = vmatpush1.msra.mxu0 0.0
  %153 = vmatprep.subr.mxu0 0.0
  %154 = vmatpush1.msra.mxu0 0.0
  %155 = vmatprep.subr.mxu0 0.0
  %156 = vmatpush1.msra.mxu0 0.0
  %157 = vmatprep.subr.mxu0 0.0
  %158 = vmatpush1.msra.mxu0 0.0
  %159 = vmatprep.subr.mxu0 0.0
  %160 = vmatpush1.msra.mxu0 0.0
  %161 = vmatprep.subr.mxu0 0.0
  %162 = vmatpush1.msra.mxu0 0.0
  %163 = vmatprep.subr.mxu0 0.0
  %164 = vmatpush1.msra.mxu0 0.0
  %165 = vmatprep.subr.mxu0 0.0
  %166 = vmatpush1.msra.mxu0 0.0
  %167 = vmatprep.subr.mxu0 0.0
  %168 = vmatpush1.msra.mxu0 0.0
  %169 = vmatprep.subr.mxu0 0.0
  %170 = vmatpush1.msra.mxu0 0.0
  %171 = vmatprep.mubr.f32.mxu0 0.0
  %172 = vmatmul.mubr.f32.gmra.mrb[0].mxu0 %v102
  %v173 = vpop.f32.mrb[0].mxu0
  %v174 = vadd.f32 %v98, %v173
  %v175 = vpop.f32.mrb[0].mxu0
  %176 = vmatprep.mubr.f32.mxu0 0.0
  %177 = vmatmul.mubr.f32.gmra.mrb[0].mxu0 %v105
  %v178 = vpop.f32.mrb[0].mxu0
  %v179 = vadd.f32 %v98, %v178
  %v180 = vpop.f32.mrb[0].mxu0
  %181 = vdwg.mxu0
  %v182 = vsel %vm61, %v174, 0.0
  %v183 = vsel %vm61, %v179, 0.0
  %v184 = vadd.f32 %v182, %v183
  %185 = vadd.xlane.f32.xlu0 %v184
  %v186 = vpop.xlane.xlu0 %185
  %v187 = vrot.slane %v186, 4
  %v188 = vadd.f32 %v186, %v187
  %v189 = vrot.slane %v188, 2
  %v190 = vadd.f32 %v188, %v189
  %v191 = vrot.slane %v190, 1
  %v192 = vadd.f32 %v190, %v191
  %s193 = vtos %v192
  %v194 = vrcp.pop 128.0
  %s195 = vtos %v194
  %s196 = smul.f32 %s193, %s195
  %v197 = vmul.f32 %v174, %v174
  %v198 = vmul.f32 %v179, %v179
  %v199 = vsel %vm61, %v197, 0.0
  %v200 = vsel %vm61, %v198, 0.0
  %v201 = vadd.f32 %v199, %v200
  %202 = vadd.xlane.f32.xlu0 %v201
  %v203 = vpop.xlane.xlu0 %202
  %v204 = vrot.slane %v203, 4
  %v205 = vadd.f32 %v203, %v204
  %v206 = vrot.slane %v205, 2
  %v207 = vadd.f32 %v205, %v206
  %v208 = vrot.slane %v207, 1
  %v209 = vadd.f32 %v207, %v208
  %s210 = vtos %v209
  %v211 = vrcp.pop 128.0
  %s212 = vtos %v211
  %s213 = smul.f32 %s210, %s212
  %s214 = smul.f32 %s196, %s196
  %s215 = ssub.f32 %s213, %s214
  %s216 = smax.f32 %s215, 0.0
  %v217 = vstv %s196
  %v218 = vsub.f32 %v174, %v217
  %v219 = vsub.f32 %v179, %v217
  %s220 = sadd.f32 %s216, 1e-05
  %v221 = vstv %s220
  %v222 = vrsqrt.pop %v221
  %s223 = vtos %v222
  %v224 = vstv %s223
  %v225 = vmul.f32 %v218, %v224
  %v226 = vmul.f32 %v219, %v224
  %v227 = vld [vmem:[%s3] sm:$0xff]
  %v228 = vld [vmem:[%s3 + $0x8] sm:$0xff]
  %v229 = vmul.f32 %v225, %v227
  %v230 = vmul.f32 %v226, %v228
  %v231 = vld [vmem:[%s4] sm:$0xff]
  %v232 = vld [vmem:[%s4 + $0x8] sm:$0xff]
  %v233 = vadd.f32 %v229, %v231
  %v234 = vadd.f32 %v230, %v232
  %235 = vst.msk [vmem:[#allocation2] sm:$0xff] %vm61, %v233
  %236 = vst.msk [vmem:[#allocation2 + $0x8] sm:$0xff] %vm61, %v234
  %v237 = vld [vmem:[#allocation2] ss:$2 sm:$0xff]
  %s238 = scalar_lea.vmem [#allocation2], 1
  %v239 = vld [vmem:[%s238] ss:$2 sm:$0xff]
  %v240 = vmax.f32 %v237, %v239
  %241 = vst.msk [vmem:[#allocation2] sm:$0x1] %vm59, 0.0
  %242 = vst.msk [vmem:[#allocation2 + $0x1] sm:$0xff] %vm61, %v240
  %243 = vst.msk [vmem:[#allocation2 + $0x9] sm:$0x1] %vm59, 0.0
  %v244 = vld [vmem:[#allocation2] sm:$0xff]
  %v245 = vld [vmem:[#allocation2 + $0x2] sm:$0xff]
  %247 = vrot.lane.b32.xlu0 %v240, 8
  %v248 = vpop.permute.xlu0 %247
  %251 = vrot.lane.b32.xlu0 %v245, 16
  %v252 = vpop.permute.xlu0 %251
  %v254 = vsel %vm61, %v244, %v248
  %v255 = vsel %vm87, %v254, %v252
  %v256 = vld [vmem:[%s5] sm:$0xff]
  %v257 = vld [vmem:[%s5 + $0x8] sm:$0xff]
  %v258 = vld [vmem:[%s5 + $0x10] sm:$0xff]
  %v259 = vld [vmem:[%s6] sm:$0x1]
  %v261 = vlaneseq
  %v262 = vshrl.u32 %v261, 7
  %v263 = vsub.s32 0, %v262
  %v264 = vrot.slane %v259, %v263
  %v267 = vsel %vm100, %v255, 0
  %269 = vmatprep.subr.mxu0 0.0
  %270 = vmatpush1.msra.mxu0 %v256
  %271 = vmatprep.subr.mxu0 0.0
  %272 = vmatpush1.msra.mxu0 %v257
  %273 = vmatprep.subr.mxu0 0.0
  %274 = vmatpush1.msra.mxu0 %v258
  %275 = vmatprep.subr.mxu0 0.0
  %276 = vmatpush1.msra.mxu0 0.0
  %277 = vmatprep.subr.mxu0 0.0
  %278 = vmatpush1.msra.mxu0 0.0
  %279 = vmatprep.subr.mxu0 0.0
  %280 = vmatpush1.msra.mxu0 0.0
  %281 = vmatprep.subr.mxu0 0.0
  %282 = vmatpush1.msra.mxu0 0.0
  %283 = vmatprep.subr.mxu0 0.0
  %284 = vmatpush1.msra.mxu0 0.0
  %285 = vmatprep.subr.mxu0 0.0
  %286 = vmatpush1.msra.mxu0 0.0
  %287 = vmatprep.subr.mxu0 0.0
  %288 = vmatpush1.msra.mxu0 0.0
  %289 = vmatprep.subr.mxu0 0.0
  %290 = vmatpush1.msra.mxu0 0.0
  %291 = vmatprep.subr.mxu0 0.0
  %292 = vmatpush1.msra.mxu0 0.0
  %293 = vmatprep.subr.mxu0 0.0
  %294 = vmatpush1.msra.mxu0 0.0
  %295 = vmatprep.subr.mxu0 0.0
  %296 = vmatpush1.msra.mxu0 0.0
  %297 = vmatprep.subr.mxu0 0.0
  %298 = vmatpush1.msra.mxu0 0.0
  %299 = vmatprep.subr.mxu0 0.0
  %300 = vmatpush1.msra.mxu0 0.0
  %301 = vmatprep.subr.mxu0 0.0
  %302 = vmatpush1.msra.mxu0 0.0
  %303 = vmatprep.subr.mxu0 0.0
  %304 = vmatpush1.msra.mxu0 0.0
  %305 = vmatprep.subr.mxu0 0.0
  %306 = vmatpush1.msra.mxu0 0.0
  %307 = vmatprep.subr.mxu0 0.0
  %308 = vmatpush1.msra.mxu0 0.0
  %309 = vmatprep.subr.mxu0 0.0
  %310 = vmatpush1.msra.mxu0 0.0
  %311 = vmatprep.subr.mxu0 0.0
  %312 = vmatpush1.msra.mxu0 0.0
  %313 = vmatprep.subr.mxu0 0.0
  %314 = vmatpush1.msra.mxu0 0.0
  %315 = vmatprep.subr.mxu0 0.0
  %316 = vmatpush1.msra.mxu0 0.0
  %317 = vmatprep.subr.mxu0 0.0
  %318 = vmatpush1.msra.mxu0 0.0
  %319 = vmatprep.subr.mxu0 0.0
  %320 = vmatpush1.msra.mxu0 0.0
  %321 = vmatprep.subr.mxu0 0.0
  %322 = vmatpush1.msra.mxu0 0.0
  %323 = vmatprep.subr.mxu0 0.0
  %324 = vmatpush1.msra.mxu0 0.0
  %325 = vmatprep.subr.mxu0 0.0
  %326 = vmatpush1.msra.mxu0 0.0
  %327 = vmatprep.subr.mxu0 0.0
  %328 = vmatpush1.msra.mxu0 0.0
  %329 = vmatprep.subr.mxu0 0.0
  %330 = vmatpush1.msra.mxu0 0.0
  %331 = vmatprep.subr.mxu0 0.0
  %332 = vmatpush1.msra.mxu0 0.0
  %333 = vmatprep.mubr.f32.mxu0 0.0
  %334 = vmatmul.mubr.f32.gmra.mrb[0].mxu0 %v267
  %v335 = vpop.f32.mrb[0].mxu0
  %v336 = vadd.f32 %v264, %v335
  %v337 = vpop.f32.mrb[0].mxu0
  %338 = vdwg.mxu0
  %v339 = vsel %vm61, %v336, 0.0
  %340 = vadd.xlane.f32.xlu0 %v339
  %v341 = vpop.xlane.xlu0 %340
  %v342 = vrot.slane %v341, 4
  %v343 = vadd.f32 %v341, %v342
  %v344 = vrot.slane %v343, 2
  %v345 = vadd.f32 %v343, %v344
  %v346 = vrot.slane %v345, 1
  %v347 = vadd.f32 %v345, %v346
  %s348 = vtos %v347
  %v349 = vrcp.pop 64.0
  %s350 = vtos %v349
  %s351 = smul.f32 %s348, %s350
  %v352 = vmul.f32 %v336, %v336
  %v353 = vsel %vm61, %v352, 0.0
  %354 = vadd.xlane.f32.xlu0 %v353
  %v355 = vpop.xlane.xlu0 %354
  %v356 = vrot.slane %v355, 4
  %v357 = vadd.f32 %v355, %v356
  %v358 = vrot.slane %v357, 2
  %v359 = vadd.f32 %v357, %v358
  %v360 = vrot.slane %v359, 1
  %v361 = vadd.f32 %v359, %v360
  %s362 = vtos %v361
  %v363 = vrcp.pop 64.0
  %s364 = vtos %v363
  %s365 = smul.f32 %s362, %s364
  %s366 = smul.f32 %s351, %s351
  %s367 = ssub.f32 %s365, %s366
  %s368 = smax.f32 %s367, 0.0
  %v369 = vstv %s351
  %v370 = vsub.f32 %v336, %v369
  %s371 = sadd.f32 %s368, 1e-05
  %v372 = vstv %s371
  %v373 = vrsqrt.pop %v372
  %s374 = vtos %v373
  %v375 = vstv %s374
  %v376 = vmul.f32 %v370, %v375
  %v377 = vld [vmem:[%s7] sm:$0xff]
  %v378 = vmul.f32 %v376, %v377
  %v379 = vld [vmem:[%s8] sm:$0xff]
  %v380 = vadd.f32 %v378, %v379
  %381 = vst.msk [vmem:[#allocation2] sm:$0xff] %vm61, %v380
  %v382 = vld [vmem:[#allocation2] ss:$2 sm:$0xf]
  %v383 = vld [vmem:[%s238] ss:$2 sm:$0xf]
  %v384 = vmax.f32 %v382, %v383
  %385 = vst.msk [vmem:[#allocation2] sm:$0x1] %vm59, 0.0
  %vm386 = vcmask 60416
  %387 = vst.msk [vmem:[#allocation2 + $0x1] sm:$0xf] %vm386, %v384
  %388 = vst.msk [vmem:[#allocation2 + $0x5] sm:$0x1] %vm59, 0.0
  %v389 = vld [vmem:[#allocation2] sm:$0xf]
  %v390 = vld [vmem:[#allocation2 + $0x2] sm:$0xf]
  %392 = vrot.lane.b32.xlu0 %v384, 8
  %v393 = vpop.permute.xlu0 %392
  %396 = vrot.lane.b32.xlu0 %v390, 16
  %v397 = vpop.permute.xlu0 %396
  %v399 = vsel %vm61, %v389, %v393
  %v400 = vsel %vm87, %v399, %v397
  %vm401 = vcmask 191488
  %402 = vst.msk [vmem:[#allocation3] sm:$0xf] %vm401, %v400
  %s403 = scalar_lea.vmem %s0, 16
  %v404 = vld [vmem:[%s403] sm:$0xff]
  %v405 = vld [vmem:[%s403 + $0x8] sm:$0xff]
  %406 = vst.msk [vmem:[#allocation2] sm:$0x1] %vm59, 0.0
  %407 = vst.msk [vmem:[#allocation2 + $0x1] sm:$0xff] %vm61, %v404
  %408 = vst.msk [vmem:[#allocation2 + $0x9] sm:$0xff] %vm61, %v405
  %409 = vst.msk [vmem:[#allocation2 + $0x11] sm:$0x1] %vm59, 0.0
  %v410 = vld [vmem:[#allocation2] sm:$0xff]
  %v411 = vld [vmem:[#allocation2 + $0x8] sm:$0xff]
  %v412 = vld [vmem:[#allocation2 + $0x2] sm:$0xff]
  %v413 = vld [vmem:[#allocation2 + $0xa] sm:$0xff]
  %416 = vrot.lane.b32.xlu0 %v404, 8
  %v417 = vpop.permute.xlu0 %416
  %418 = vrot.lane.b32.xlu0 %v405, 8
  %v419 = vpop.permute.xlu0 %418
  %424 = vrot.lane.b32.xlu0 %v412, 16
  %v425 = vpop.permute.xlu0 %424
  %426 = vrot.lane.b32.xlu0 %v413, 16
  %v427 = vpop.permute.xlu0 %426
  %v430 = vsel %vm61, %v410, %v417
  %v431 = vsel %vm61, %v411, %v419
  %v432 = vsel %vm87, %v430, %v425
  %v433 = vsel %vm87, %v431, %v427
  %v434 = vld [vmem:[%s1] sm:$0xff]
  %v435 = vld [vmem:[%s1 + $0x8] sm:$0xff]
  %v436 = vld [vmem:[%s1 + $0x10] sm:$0xff]
  %v437 = vld [vmem:[%s2] sm:$0x1]
  %v439 = vlaneseq
  %v440 = vshrl.u32 %v439, 7
  %v441 = vsub.s32 0, %v440
  %v442 = vrot.slane %v437, %v441
  %v445 = vsel %vm100, %v432, 0
  %v448 = vsel %vm100, %v433, 0
  %450 = vmatprep.subr.mxu0 0.0
  %451 = vmatpush1.msra.mxu0 %v434
  %452 = vmatprep.subr.mxu0 0.0
  %453 = vmatpush1.msra.mxu0 %v435
  %454 = vmatprep.subr.mxu0 0.0
  %455 = vmatpush1.msra.mxu0 %v436
  %456 = vmatprep.subr.mxu0 0.0
  %457 = vmatpush1.msra.mxu0 0.0
  %458 = vmatprep.subr.mxu0 0.0
  %459 = vmatpush1.msra.mxu0 0.0
  %460 = vmatprep.subr.mxu0 0.0
  %461 = vmatpush1.msra.mxu0 0.0
  %462 = vmatprep.subr.mxu0 0.0
  %463 = vmatpush1.msra.mxu0 0.0
  %464 = vmatprep.subr.mxu0 0.0
  %465 = vmatpush1.msra.mxu0 0.0
  %466 = vmatprep.subr.mxu0 0.0
  %467 = vmatpush1.msra.mxu0 0.0
  %468 = vmatprep.subr.mxu0 0.0
  %469 = vmatpush1.msra.mxu0 0.0
  %470 = vmatprep.subr.mxu0 0.0
  %471 = vmatpush1.msra.mxu0 0.0
  %472 = vmatprep.subr.mxu0 0.0
  %473 = vmatpush1.msra.mxu0 0.0
  %474 = vmatprep.subr.mxu0 0.0
  %475 = vmatpush1.msra.mxu0 0.0
  %476 = vmatprep.subr.mxu0 0.0
  %477 = vmatpush1.msra.mxu0 0.0
  %478 = vmatprep.subr.mxu0 0.0
  %479 = vmatpush1.msra.mxu0 0.0
  %480 = vmatprep.subr.mxu0 0.0
  %481 = vmatpush1.msra.mxu0 0.0
  %482 = vmatprep.subr.mxu0 0.0
  %483 = vmatpush1.msra.mxu0 0.0
  %484 = vmatprep.subr.mxu0 0.0
  %485 = vmatpush1.msra.mxu0 0.0
  %486 = vmatprep.subr.mxu0 0.0
  %487 = vmatpush1.msra.mxu0 0.0
  %488 = vmatprep.subr.mxu0 0.0
  %489 = vmatpush1.msra.mxu0 0.0
  %490 = vmatprep.subr.mxu0 0.0
  %491 = vmatpush1.msra.mxu0 0.0
  %492 = vmatprep.subr.mxu0 0.0
  %493 = vmatpush1.msra.mxu0 0.0
  %494 = vmatprep.subr.mxu0 0.0
  %495 = vmatpush1.msra.mxu0 0.0
  %496 = vmatprep.subr.mxu0 0.0
  %497 = vmatpush1.msra.mxu0 0.0
  %498 = vmatprep.subr.mxu0 0.0
  %499 = vmatpush1.msra.mxu0 0.0
  %500 = vmatprep.subr.mxu0 0.0
  %501 = vmatpush1.msra.mxu0 0.0
  %502 = vmatprep.subr.mxu0 0.0
  %503 = vmatpush1.msra.mxu0 0.0
  %504 = vmatprep.subr.mxu0 0.0
  %505 = vmatpush1.msra.mxu0 0.0
  %506 = vmatprep.subr.mxu0 0.0
  %507 = vmatpush1.msra.mxu0 0.0
  %508 = vmatprep.subr.mxu0 0.0
  %509 = vmatpush1.msra.mxu0 0.0
  %510 = vmatprep.subr.mxu0 0.0
  %511 = vmatpush1.msra.mxu0 0.0
  %512 = vmatprep.subr.mxu0 0.0
  %513 = vmatpush1.msra.mxu0 0.0
  %514 = vmatprep.mubr.f32.mxu0 0.0
  %515 = vmatmul.mubr.f32.gmra.mrb[0].mxu0 %v445
  %v516 = vpop.f32.mrb[0].mxu0
  %v517 = vadd.f32 %v442, %v516
  %v518 = vpop.f32.mrb[0].mxu0
  %519 = vmatprep.mubr.f32.mxu0 0.0
  %520 = vmatmul.mubr.f32.gmra.mrb[0].mxu0 %v448
  %v521 = vpop.f32.mrb[0].mxu0
  %v522 = vadd.f32 %v442, %v521
  %v523 = vpop.f32.mrb[0].mxu0
  %524 = vdwg.mxu0
  %v525 = vsel %vm61, %v517, 0.0
  %v526 = vsel %vm61, %v522, 0.0
  %v527 = vadd.f32 %v525, %v526
  %528 = vadd.xlane.f32.xlu0 %v527
  %v529 = vpop.xlane.xlu0 %528
  %v530 = vrot.slane %v529, 4
  %v531 = vadd.f32 %v529, %v530
  %v532 = vrot.slane %v531, 2
  %v533 = vadd.f32 %v531, %v532
  %v534 = vrot.slane %v533, 1
  %v535 = vadd.f32 %v533, %v534
  %s536 = vtos %v535
  %v537 = vrcp.pop 128.0
  %s538 = vtos %v537
  %s539 = smul.f32 %s536, %s538
  %v540 = vmul.f32 %v517, %v517
  %v541 = vmul.f32 %v522, %v522
  %v542 = vsel %vm61, %v540, 0.0
  %v543 = vsel %vm61, %v541, 0.0
  %v544 = vadd.f32 %v542, %v543
  %545 = vadd.xlane.f32.xlu0 %v544
  %v546 = vpop.xlane.xlu0 %545
  %v547 = vrot.slane %v546, 4
  %v548 = vadd.f32 %v546, %v547
  %v549 = vrot.slane %v548, 2
  %v550 = vadd.f32 %v548, %v549
  %v551 = vrot.slane %v550, 1
  %v552 = vadd.f32 %v550, %v551
  %s553 = vtos %v552
  %v554 = vrcp.pop 128.0
  %s555 = vtos %v554
  %s556 = smul.f32 %s553, %s555
  %s557 = smul.f32 %s539, %s539
  %s558 = ssub.f32 %s556, %s557
  %s559 = smax.f32 %s558, 0.0
  %v560 = vstv %s539
  %v561 = vsub.f32 %v517, %v560
  %v562 = vsub.f32 %v522, %v560
  %s563 = sadd.f32 %s559, 1e-05
  %v564 = vstv %s563
  %v565 = vrsqrt.pop %v564
  %s566 = vtos %v565
  %v567 = vstv %s566
  %v568 = vmul.f32 %v561, %v567
  %v569 = vmul.f32 %v562, %v567
  %v570 = vld [vmem:[%s3] sm:$0xff]
  %v571 = vld [vmem:[%s3 + $0x8] sm:$0xff]
  %v572 = vmul.f32 %v568, %v570
  %v573 = vmul.f32 %v569, %v571
  %v574 = vld [vmem:[%s4] sm:$0xff]
  %v575 = vld [vmem:[%s4 + $0x8] sm:$0xff]
  %v576 = vadd.f32 %v572, %v574
  %v577 = vadd.f32 %v573, %v575
  %578 = vst.msk [vmem:[#allocation2] sm:$0xff] %vm61, %v576
  %579 = vst.msk [vmem:[#allocation2 + $0x8] sm:$0xff] %vm61, %v577
  %v580 = vld [vmem:[#allocation2] ss:$2 sm:$0xff]
  %v581 = vld [vmem:[%s238] ss:$2 sm:$0xff]
  %v582 = vmax.f32 %v580, %v581
  %583 = vst.msk [vmem:[#allocation2] sm:$0x1] %vm59, 0.0
  %584 = vst.msk [vmem:[#allocation2 + $0x1] sm:$0xff] %vm61, %v582
  %585 = vst.msk [vmem:[#allocation2 + $0x9] sm:$0x1] %vm59, 0.0
  %v586 = vld [vmem:[#allocation2] sm:$0xff]
  %v587 = vld [vmem:[#allocation2 + $0x2] sm:$0xff]
  %589 = vrot.lane.b32.xlu0 %v582, 8
  %v590 = vpop.permute.xlu0 %589
  %593 = vrot.lane.b32.xlu0 %v587, 16
  %v594 = vpop.permute.xlu0 %593
  %v596 = vsel %vm61, %v586, %v590
  %v597 = vsel %vm87, %v596, %v594
  %v598 = vld [vmem:[%s5] sm:$0xff]
  %v599 = vld [vmem:[%s5 + $0x8] sm:$0xff]
  %v600 = vld [vmem:[%s5 + $0x10] sm:$0xff]
  %v601 = vld [vmem:[%s6] sm:$0x1]
  %v603 = vlaneseq
  %v604 = vshrl.u32 %v603, 7
  %v605 = vsub.s32 0, %v604
  %v606 = vrot.slane %v601, %v605
  %v609 = vsel %vm100, %v597, 0
  %611 = vmatprep.subr.mxu0 0.0
  %612 = vmatpush1.msra.mxu0 %v598
  %613 = vmatprep.subr.mxu0 0.0
  %614 = vmatpush1.msra.mxu0 %v599
  %615 = vmatprep.subr.mxu0 0.0
  %616 = vmatpush1.msra.mxu0 %v600
  %617 = vmatprep.subr.mxu0 0.0
  %618 = vmatpush1.msra.mxu0 0.0
  %619 = vmatprep.subr.mxu0 0.0
  %620 = vmatpush1.msra.mxu0 0.0
  %621 = vmatprep.subr.mxu0 0.0
  %622 = vmatpush1.msra.mxu0 0.0
  %623 = vmatprep.subr.mxu0 0.0
  %624 = vmatpush1.msra.mxu0 0.0
  %625 = vmatprep.subr.mxu0 0.0
  %626 = vmatpush1.msra.mxu0 0.0
  %627 = vmatprep.subr.mxu0 0.0
  %628 = vmatpush1.msra.mxu0 0.0
  %629 = vmatprep.subr.mxu0 0.0
  %630 = vmatpush1.msra.mxu0 0.0
  %631 = vmatprep.subr.mxu0 0.0
  %632 = vmatpush1.msra.mxu0 0.0
  %633 = vmatprep.subr.mxu0 0.0
  %634 = vmatpush1.msra.mxu0 0.0
  %635 = vmatprep.subr.mxu0 0.0
  %636 = vmatpush1.msra.mxu0 0.0
  %637 = vmatprep.subr.mxu0 0.0
  %638 = vmatpush1.msra.mxu0 0.0
  %639 = vmatprep.subr.mxu0 0.0
  %640 = vmatpush1.msra.mxu0 0.0
  %641 = vmatprep.subr.mxu0 0.0
  %642 = vmatpush1.msra.mxu0 0.0
  %643 = vmatprep.subr.mxu0 0.0
  %644 = vmatpush1.msra.mxu0 0.0
  %645 = vmatprep.subr.mxu0 0.0
  %646 = vmatpush1.msra.mxu0 0.0
  %647 = vmatprep.subr.mxu0 0.0
  %648 = vmatpush1.msra.mxu0 0.0
  %649 = vmatprep.subr.mxu0 0.0
  %650 = vmatpush1.msra.mxu0 0.0
  %651 = vmatprep.subr.mxu0 0.0
  %652 = vmatpush1.msra.mxu0 0.0
  %653 = vmatprep.subr.mxu0 0.0
  %654 = vmatpush1.msra.mxu0 0.0
  %655 = vmatprep.subr.mxu0 0.0
  %656 = vmatpush1.msra.mxu0 0.0
  %657 = vmatprep.subr.mxu0 0.0
  %658 = vmatpush1.msra.mxu0 0.0
  %659 = vmatprep.subr.mxu0 0.0
  %660 = vmatpush1.msra.mxu0 0.0
  %661 = vmatprep.subr.mxu0 0.0
  %662 = vmatpush1.msra.mxu0 0.0
  %663 = vmatprep.subr.mxu0 0.0
  %664 = vmatpush1.msra.mxu0 0.0
  %665 = vmatprep.subr.mxu0 0.0
  %666 = vmatpush1.msra.mxu0 0.0
  %667 = vmatprep.subr.mxu0 0.0
  %668 = vmatpush1.msra.mxu0 0.0
  %669 = vmatprep.subr.mxu0 0.0
  %670 = vmatpush1.msra.mxu0 0.0
  %671 = vmatprep.subr.mxu0 0.0
  %672 = vmatpush1.msra.mxu0 0.0
  %673 = vmatprep.subr.mxu0 0.0
  %674 = vmatpush1.msra.mxu0 0.0
  %675 = vmatprep.mubr.f32.mxu0 0.0
  %676 = vmatmul.mubr.f32.gmra.mrb[0].mxu0 %v609
  %v677 = vpop.f32.mrb[0].mxu0
  %v678 = vadd.f32 %v606, %v677
  %v679 = vpop.f32.mrb[0].mxu0
  %680 = vdwg.mxu0
  %v681 = vsel %vm61, %v678, 0.0
  %682 = vadd.xlane.f32.xlu0 %v681
  %v683 = vpop.xlane.xlu0 %682
  %v684 = vrot.slane %v683, 4
  %v685 = vadd.f32 %v683, %v684
  %v686 = vrot.slane %v685, 2
  %v687 = vadd.f32 %v685, %v686
  %v688 = vrot.slane %v687, 1
  %v689 = vadd.f32 %v687, %v688
  %s690 = vtos %v689
  %v691 = vrcp.pop 64.0
  %s692 = vtos %v691
  %s693 = smul.f32 %s690, %s692
  %v694 = vmul.f32 %v678, %v678
  %v695 = vsel %vm61, %v694, 0.0
  %696 = vadd.xlane.f32.xlu0 %v695
  %v697 = vpop.xlane.xlu0 %696
  %v698 = vrot.slane %v697, 4
  %v699 = vadd.f32 %v697, %v698
  %v700 = vrot.slane %v699, 2
  %v701 = vadd.f32 %v699, %v700
  %v702 = vrot.slane %v701, 1
  %v703 = vadd.f32 %v701, %v702
  %s704 = vtos %v703
  %v705 = vrcp.pop 64.0
  %s706 = vtos %v705
  %s707 = smul.f32 %s704, %s706
  %s708 = smul.f32 %s693, %s693
  %s709 = ssub.f32 %s707, %s708
  %s710 = smax.f32 %s709, 0.0
  %v711 = vstv %s693
  %v712 = vsub.f32 %v678, %v711
  %s713 = sadd.f32 %s710, 1e-05
  %v714 = vstv %s713
  %v715 = vrsqrt.pop %v714
  %s716 = vtos %v715
  %v717 = vstv %s716
  %v718 = vmul.f32 %v712, %v717
  %v719 = vld [vmem:[%s7] sm:$0xff]
  %v720 = vmul.f32 %v718, %v719
  %v721 = vld [vmem:[%s8] sm:$0xff]
  %v722 = vadd.f32 %v720, %v721
  %723 = vst.msk [vmem:[#allocation2] sm:$0xff] %vm61, %v722
  %v724 = vld [vmem:[#allocation2] ss:$2 sm:$0xf]
  %v725 = vld [vmem:[%s238] ss:$2 sm:$0xf]
  %v726 = vmax.f32 %v724, %v725
  %727 = vst.msk [vmem:[#allocation2] sm:$0x1] %vm59, 0.0
  %728 = vst.msk [vmem:[#allocation2 + $0x1] sm:$0xf] %vm386, %v726
  %729 = vst.msk [vmem:[#allocation2 + $0x5] sm:$0x1] %vm59, 0.0
  %v730 = vld [vmem:[#allocation2] sm:$0xf]
  %v731 = vld [vmem:[#allocation2 + $0x2] sm:$0xf]
  %733 = vrot.lane.b32.xlu0 %v726, 8
  %v734 = vpop.permute.xlu0 %733
  %737 = vrot.lane.b32.xlu0 %v731, 16
  %v738 = vpop.permute.xlu0 %737
  %v740 = vsel %vm61, %v730, %v734
  %v741 = vsel %vm87, %v740, %v738
  %742 = vst.msk [vmem:[#allocation3 + $0x4] sm:$0xf] %vm401, %v741
  %v743 = vld [vmem:[#allocation3] sm:$0xff]
  %v744 = vpack.c.bf16 %v743, %v743
  %v745 = vld [vmem:[%s9] sm:$0xf]
  %v746 = vld [vmem:[%s9 + $0x4] sm:$0xf]
  %v747 = vld [vmem:[%s9 + $0x8] sm:$0xf]
  %v751 = vunpack.c.l.b16 %v745
  %v752 = vunpack.c.l.b16 %v746
  %v753 = vunpack.c.l.b16 %v747
  %v754 = vpack.c.b16 %v752, %v751
  %v755 = vpack.c.b16 %v753, %v753
  %v758 = vsel %vm100, %v744, 0
  %vm760 = vcmask 1043456
  %v762 = vsel %vm760, %v755, 0
  %764 = vmatprep.subr.bf16.mxu0 0
  %765 = vmatpush1.bf16.msra.mxu0 %v754
  %766 = vmatprep.subr.bf16.mxu0 0
  %767 = vmatpush1.bf16.msra.mxu0 %v762
  %768 = vmatprep.subr.bf16.mxu0 0
  %769 = vmatpush1.bf16.msra.mxu0 0
  %770 = vmatprep.subr.bf16.mxu0 0
  %771 = vmatpush1.bf16.msra.mxu0 0
  %772 = vmatprep.subr.bf16.mxu0 0
  %773 = vmatpush1.bf16.msra.mxu0 0
  %774 = vmatprep.subr.bf16.mxu0 0
  %775 = vmatpush1.bf16.msra.mxu0 0
  %776 = vmatprep.subr.bf16.mxu0 0
  %777 = vmatpush1.bf16.msra.mxu0 0
  %778 = vmatprep.subr.bf16.mxu0 0
  %779 = vmatpush1.bf16.msra.mxu0 0
  %780 = vmatprep.subr.bf16.mxu0 0
  %781 = vmatpush1.bf16.msra.mxu0 0
  %782 = vmatprep.subr.bf16.mxu0 0
  %783 = vmatpush1.bf16.msra.mxu0 0
  %784 = vmatprep.subr.bf16.mxu0 0
  %785 = vmatpush1.bf16.msra.mxu0 0
  %786 = vmatprep.subr.bf16.mxu0 0
  %787 = vmatpush1.bf16.msra.mxu0 0
  %788 = vmatprep.subr.bf16.mxu0 0
  %789 = vmatpush1.bf16.msra.mxu0 0
  %790 = vmatprep.subr.bf16.mxu0 0
  %791 = vmatpush1.bf16.msra.mxu0 0
  %792 = vmatprep.subr.bf16.mxu0 0
  %793 = vmatpush1.bf16.msra.mxu0 0
  %794 = vmatprep.subr.bf16.mxu0 0
  %795 = vmatpush1.bf16.msra.mxu0 0
  %796 = vmatprep.mubr.bf16.mxu0 0
  %797 = vmatmul.mubr.bf16.gmra.mrb[0].mxu0 %v758
  %v798 = vpop.f32.mrb[0].mxu0
  %v799 = vadd.f32 0.0, %v798
  %v800 = vpop.f32.mrb[0].mxu0
  %v801 = vpop.f32.mrb[0].mxu0
  %v802 = vpop.f32.mrb[0].mxu0
  %803 = vdwg.mxu0
  %vm804 = vcmask 523264
  %805 = vst.msk [vmem:[#allocation4] sm:$0xff] %vm804, %v799
  %v806 = vld [vmem:[#allocation4] sm:$0xf]
  %vm807 = vcmask 519168
  %v808 = vsel %vm807, %v806, -inf
  %v809 = vrot.slane %v808, 4
  %v810 = vmax.f32 %v808, %v809
  %v811 = vrot.slane %v810, 2
  %v812 = vmax.f32 %v810, %v811
  %v813 = vrot.slane %v812, 1
  %v814 = vmax.f32 %v812, %v813
  %vm815 = vcmask 516096
  %816 = vst.msk [vmem:[#allocation5] sm:$0x1] %vm815, %v814
  %v817 = vld [vmem:[#allocation4 + $0x4] sm:$0xf]
  %v818 = vsel %vm807, %v817, -inf
  %v819 = vrot.slane %v818, 4
  %v820 = vmax.f32 %v818, %v819
  %v821 = vrot.slane %v820, 2
  %v822 = vmax.f32 %v820, %v821
  %v823 = vrot.slane %v822, 1
  %v824 = vmax.f32 %v822, %v823
  %825 = vst.msk [vmem:[#allocation5 + $0x1] sm:$0x1] %vm815, %v824
  %v826 = vld [vmem:[#allocation5] sm:$0x3]
  %v827 = vld [vmem:[%s10] sm:$0x1]
  %v829 = vlaneseq
  %v830 = vshrl.u32 %v829, 7
  %v831 = vsub.s32 0, %v830
  %v832 = vrot.slane %v827, %v831
  %v834 = vadd.f32 %v826, %v832
  %v835 = vpack.c.bf16 %v834, %v834
  %v836 = vld [vmem:[%s11] sm:$0xf]
  %v837 = vld [vmem:[%s11 + $0x4] sm:$0xf]
  %v838 = vld [vmem:[%s11 + $0x8] sm:$0xf]
  %v839 = vld [vmem:[%s11 + $0xc] sm:$0xf]
  %v840 = vld [vmem:[%s11 + $0x10] sm:$0xf]
  %v841 = vld [vmem:[%s11 + $0x14] sm:$0xf]
  %v842 = vld [vmem:[%s11 + $0x18] sm:$0xf]
  %v843 = vld [vmem:[%s11 + $0x1c] sm:$0xf]
  %v844 = vld [vmem:[%s12] sm:$0x1]
  %v846 = vlaneseq
  %v847 = vshrl.u32 %v846, 7
  %v848 = vsub.s32 0, %v847
  %v849 = vrot.slane %v844, %v848
  %v859 = vunpack.c.l.b16 %v836
  %v860 = vunpack.c.l.b16 %v837
  %v861 = vunpack.c.l.b16 %v838
  %v862 = vunpack.c.l.b16 %v839
  %v863 = vunpack.c.l.b16 %v840
  %v864 = vunpack.c.l.b16 %v841
  %v865 = vunpack.c.l.b16 %v842
  %v866 = vunpack.c.l.b16 %v843
  %v867 = vpack.c.b16 %v860, %v859
  %v868 = vpack.c.b16 %v862, %v861
  %v869 = vpack.c.b16 %v864, %v863
  %v870 = vpack.c.b16 %v866, %v865
  %v876 = vsel %vm804, %v835, 0
  %878 = vmatprep.subr.bf16.mxu0 0
  %879 = vmatpush1.bf16.msra.mxu0 %v867
  %880 = vmatprep.subr.bf16.mxu0 0
  %881 = vmatpush1.bf16.msra.mxu0 %v868
  %882 = vmatprep.subr.bf16.mxu0 0
  %883 = vmatpush1.bf16.msra.mxu0 %v869
  %884 = vmatprep.subr.bf16.mxu0 0
  %885 = vmatpush1.bf16.msra.mxu0 %v870
  %886 = vmatprep.subr.bf16.mxu0 0
  %887 = vmatpush1.bf16.msra.mxu0 0
  %888 = vmatprep.subr.bf16.mxu0 0
  %889 = vmatpush1.bf16.msra.mxu0 0
  %890 = vmatprep.subr.bf16.mxu0 0
  %891 = vmatpush1.bf16.msra.mxu0 0
  %892 = vmatprep.subr.bf16.mxu0 0
  %893 = vmatpush1.bf16.msra.mxu0 0
  %894 = vmatprep.subr.bf16.mxu0 0
  %895 = vmatpush1.bf16.msra.mxu0 0
  %896 = vmatprep.subr.bf16.mxu0 0
  %897 = vmatpush1.bf16.msra.mxu0 0
  %898 = vmatprep.subr.bf16.mxu0 0
  %899 = vmatpush1.bf16.msra.mxu0 0
  %900 = vmatprep.subr.bf16.mxu0 0
  %901 = vmatpush1.bf16.msra.mxu0 0
  %902 = vmatprep.subr.bf16.mxu0 0
  %903 = vmatpush1.bf16.msra.mxu0 0
  %904 = vmatprep.subr.bf16.mxu0 0
  %905 = vmatpush1.bf16.msra.mxu0 0
  %906 = vmatprep.subr.bf16.mxu0 0
  %907 = vmatpush1.bf16.msra.mxu0 0
  %908 = vmatprep.subr.bf16.mxu0 0
  %909 = vmatpush1.bf16.msra.mxu0 0
  %910 = vmatprep.mubr.bf16.mxu0 0
  %911 = vmatmul.mubr.bf16.gmra.mrb[0].mxu0 %v876
  %v912 = vpop.f32.mrb[0].mxu0
  %v913 = vadd.f32 %v849, %v912
  %v914 = vpop.f32.mrb[0].mxu0
  %v915 = vpop.f32.mrb[0].mxu0
  %v916 = vpop.f32.mrb[0].mxu0
  %917 = vdwg.mxu0
  %v918 = vpack.c.bf16 %v913, %v913
  %v919 = vld [vmem:[%s13] sm:$0xf]
  %v920 = vld [vmem:[%s13 + $0x4] sm:$0xf]
  %v921 = vld [vmem:[%s13 + $0x8] sm:$0xf]
  %v922 = vld [vmem:[%s13 + $0xc] sm:$0xf]
  %v923 = vld [vmem:[%s14] sm:$0x1]
  %v925 = vlaneseq
  %v926 = vshrl.u32 %v925, 7
  %v927 = vsub.s32 0, %v926
  %v928 = vrot.slane %v923, %v927
  %v934 = vunpack.c.l.b16 %v919
  %v935 = vunpack.c.l.b16 %v920
  %v936 = vunpack.c.l.b16 %v921
  %v937 = vunpack.c.l.b16 %v922
  %v938 = vpack.c.b16 %v935, %v934
  %v939 = vpack.c.b16 %v937, %v936
  %vm942 = vcmask 261120
  %v944 = vsel %vm942, %v918, 0
  %946 = vmatprep.subr.bf16.mxu0 0
  %947 = vmatpush1.bf16.msra.mxu0 %v938
  %948 = vmatprep.subr.bf16.mxu0 0
  %949 = vmatpush1.bf16.msra.mxu0 %v939
  %950 = vmatprep.subr.bf16.mxu0 0
  %951 = vmatpush1.bf16.msra.mxu0 0
  %952 = vmatprep.subr.bf16.mxu0 0
  %953 = vmatpush1.bf16.msra.mxu0 0
  %954 = vmatprep.subr.bf16.mxu0 0
  %955 = vmatpush1.bf16.msra.mxu0 0
  %956 = vmatprep.subr.bf16.mxu0 0
  %957 = vmatpush1.bf16.msra.mxu0 0
  %958 = vmatprep.subr.bf16.mxu0 0
  %959 = vmatpush1.bf16.msra.mxu0 0
  %960 = vmatprep.subr.bf16.mxu0 0
  %961 = vmatpush1.bf16.msra.mxu0 0
  %962 = vmatprep.subr.bf16.mxu0 0
  %963 = vmatpush1.bf16.msra.mxu0 0
  %964 = vmatprep.subr.bf16.mxu0 0
  %965 = vmatpush1.bf16.msra.mxu0 0
  %966 = vmatprep.subr.bf16.mxu0 0
  %967 = vmatpush1.bf16.msra.mxu0 0
  %968 = vmatprep.subr.bf16.mxu0 0
  %969 = vmatpush1.bf16.msra.mxu0 0
  %970 = vmatprep.subr.bf16.mxu0 0
  %971 = vmatpush1.bf16.msra.mxu0 0
  %972 = vmatprep.subr.bf16.mxu0 0
  %973 = vmatpush1.bf16.msra.mxu0 0
  %974 = vmatprep.subr.bf16.mxu0 0
  %975 = vmatpush1.bf16.msra.mxu0 0
  %976 = vmatprep.subr.bf16.mxu0 0
  %977 = vmatpush1.bf16.msra.mxu0 0
  %978 = vmatprep.mubr.bf16.mxu0 0
  %979 = vmatmul.mubr.bf16.gmra.mrb[0].mxu0 %v944
  %v980 = vpop.f32.mrb[0].mxu0
  %v981 = vadd.f32 %v928, %v980
  %v982 = vpop.f32.mrb[0].mxu0
  %v983 = vpop.f32.mrb[0].mxu0
  %v984 = vpop.f32.mrb[0].mxu0
  %985 = vdwg.mxu0
  %v986 = vpack.c.bf16 %v981, %v981
  %v987 = vld [vmem:[%s15] sm:$0xf]
  %v988 = vld [vmem:[%s15 + $0x4] sm:$0xf]
  %v989 = vld [vmem:[%s15 + $0x8] sm:$0xf]
  %v990 = vld [vmem:[%s15 + $0xc] sm:$0xf]
  %v991 = vld [vmem:[%s16] sm:$0x1]
  %v993 = vlaneseq
  %v994 = vshrl.u32 %v993, 7
  %v995 = vsub.s32 0, %v994
  %v996 = vrot.slane %v991, %v995
  %v1002 = vunpack.c.l.b16 %v987
  %v1003 = vunpack.c.l.b16 %v988
  %v1004 = vunpack.c.l.b16 %v989
  %v1005 = vunpack.c.l.b16 %v990
  %v1006 = vpack.c.b16 %v1003, %v1002
  %v1007 = vpack.c.b16 %v1005, %v1004
  %v1011 = vsel %vm942, %v986, 0
  %1013 = vmatprep.subr.bf16.mxu0 0
  %1014 = vmatpush1.bf16.msra.mxu0 %v1006
  %1015 = vmatprep.subr.bf16.mxu0 0
  %1016 = vmatpush1.bf16.msra.mxu0 %v1007
  %1017 = vmatprep.subr.bf16.mxu0 0
  %1018 = vmatpush1.bf16.msra.mxu0 0
  %1019 = vmatprep.subr.bf16.mxu0 0
  %1020 = vmatpush1.bf16.msra.mxu0 0
  %1021 = vmatprep.subr.bf16.mxu0 0
  %1022 = vmatpush1.bf16.msra.mxu0 0
  %1023 = vmatprep.subr.bf16.mxu0 0
  %1024 = vmatpush1.bf16.msra.mxu0 0
  %1025 = vmatprep.subr.bf16.mxu0 0
  %1026 = vmatpush1.bf16.msra.mxu0 0
  %1027 = vmatprep.subr.bf16.mxu0 0
  %1028 = vmatpush1.bf16.msra.mxu0 0
  %1029 = vmatprep.subr.bf16.mxu0 0
  %1030 = vmatpush1.bf16.msra.mxu0 0
  %1031 = vmatprep.subr.bf16.mxu0 0
  %1032 = vmatpush1.bf16.msra.mxu0 0
  %1033 = vmatprep.subr.bf16.mxu0 0
  %1034 = vmatpush1.bf16.msra.mxu0 0
  %1035 = vmatprep.subr.bf16.mxu0 0
  %1036 = vmatpush1.bf16.msra.mxu0 0
  %1037 = vmatprep.subr.bf16.mxu0 0
  %1038 = vmatpush1.bf16.msra.mxu0 0
  %1039 = vmatprep.subr.bf16.mxu0 0
  %1040 = vmatpush1.bf16.msra.mxu0 0
  %1041 = vmatprep.subr.bf16.mxu0 0
  %1042 = vmatpush1.bf16.msra.mxu0 0
  %1043 = vmatprep.subr.bf16.mxu0 0
  %1044 = vmatpush1.bf16.msra.mxu0 0
  %1045 = vmatprep.mubr.bf16.mxu0 0
  %1046 = vmatmul.mubr.bf16.gmra.mrb[0].mxu0 %v1011
  %v1047 = vpop.f32.mrb[0].mxu0
  %v1048 = vadd.f32 %v996, %v1047
  %v1049 = vpop.f32.mrb[0].mxu0
  %v1050 = vpop.f32.mrb[0].mxu0
  %v1051 = vpop.f32.mrb[0].mxu0
  %1052 = vdwg.mxu0
  %v1053 = vlaneseq
  %v1054 = vand.u32 %v1053, 127
  %vm1055 = vcmp.eq.s32.totalorder %v1054, 1
  %v1056 = vxor.u32 %v1048, 2147483648
  %v1057 = vmul.f32 %v1056, 1.442695
  %v1058 = vpow.pop %v1057
  %v1059 = vadd.f32 %v1058, 1.0
  %v1060 = vrcp.pop %v1059
  %v1061 = vmul.f32 1.0, %v1060
  %v1062 = vsel %vm1055, %v1061, %v1048
  %vm1063 = vcmask 9216
  %1064 = vst.msk [vmem:[%s17] sm:$0x3] %vm1063, %v1062
  // Predicated region
  $region70: #{cnn_model_forward.1} parent=0 // pred_check
    _
  $region71: #{cnn_model_forward.1} parent=0 // pred_check_branch
    %1066 = sbr.rel (0) target = $region73
  $region72: #{cnn_model_forward.1} parent=0 // pred_region
    _
  $region73: #{cnn_model_forward.1} parent=0 // pred_fallthru
    _
  // Predicated region
  $region74: #{cnn_model_forward.1} parent=0 // pred_check
    _
  $region75: #{cnn_model_forward.1} parent=0 // pred_check_branch
    %1068 = sbr.rel (0) target = $region77
  $region76: #{cnn_model_forward.1} parent=0 // pred_region
    _
  $region77: #{cnn_model_forward.1} parent=0 // pred_fallthru
    _

</llo_original>
